<compile_context>
chip_gen: v6e
topology: v6e:2x2x1
jax: 0.10.0
libtpu: 0.0.40
codegen_flags: <defaults>
</compile_context>

<pallas_src>
import jax
import jax.numpy as jnp
import numpy as np
from jax.experimental import pallas as pl
from jax.experimental.pallas import tpu as pltpu

# ----------------------------- model config ---------------------------------
VOCAB_SIZE = 64
EMBED_DIM = 32
HIDDEN_DIM = 32
NUM_LAYERS = 2
BATCH = 2
SEQ = 8


# ----------------------------- fused Pallas kernel --------------------------
def make_fused_kernel(T, B, Bp, E, H, V, L):
    """Embedding gather + L LSTM layers (time-major, batch padded to Bp) + FC head."""

    def kernel(*refs):
        it = iter(refs)
        tok_ref = next(it)                                        # (B, T) int32   SMEM
        emb_ref = next(it)                                        # (V, 1, E)      VMEM
        layer_refs = [(next(it), next(it), next(it)) for _ in range(L)]  # (W_ih, W_hh, b)
        h0_ref = next(it)                                         # (L, Bp, H)
        c0_ref = next(it)                                         # (L, Bp, H)
        wfc_ref = next(it)                                        # (H, V)
        bfc_ref = next(it)                                        # (1, V)
        logits_ref = next(it)                                     # (T*Bp, V)  out
        hn_ref = next(it)                                         # (L, Bp, H) out
        cn_ref = next(it)                                         # (L, Bp, H) out
        x0_buf = next(it)                                         # (T*Bp, E) VMEM scratch

        # ---- Exact in-kernel embedding gather (one-time setup, off the serial path):
        # token scalars read from SMEM index the VMEM-resident table; padded batch
        # rows stay zero (they never mix with real rows in the LSTM).
        x0_buf[...] = jnp.zeros((T * Bp, E), jnp.float32)
        for t in range(T):
            for b in range(B):
                tok = tok_ref[b, t]                               # scalar from SMEM
                x0_buf[pl.ds(t * Bp + b, 1), :] = emb_ref[tok]    # (1, E) dynamic row
        x = x0_buf[...]                                           # (T*Bp, E) time-major

        for l in range(L):
            wih_ref, whh_ref, b_ref = layer_refs[l]

            # Hoisted input projection + combined bias for the whole sequence:
            # one MXU matmul per layer; serial path only does h @ W_hh.
            gates_in = (jnp.dot(x, wih_ref[...], preferred_element_type=jnp.float32)
                        + b_ref[...])                             # (T*Bp, 4H)
            w_hh = whh_ref[...]                                   # (H, 4H)

            h = h0_ref[l]                                         # (Bp, H)
            c = c0_ref[l]                                         # (Bp, H)

            hs = []
            for t in range(T):
                # Bp == 8 -> sublane-tile-aligned slice: full vregs, no masking.
                g = gates_in[t * Bp:(t + 1) * Bp, :] + jnp.dot(
                    h, w_hh, preferred_element_type=jnp.float32)  # (Bp, 4H)
                # Whole-vreg EUP activations, then 32-lane gate chunks [i, f, g, o].
                sig = jax.nn.sigmoid(g)
                th = jnp.tanh(g)
                i_g = sig[:, 0 * H:1 * H]
                f_g = sig[:, 1 * H:2 * H]
                g_g = th[:, 2 * H:3 * H]
                o_g = sig[:, 3 * H:4 * H]
                c = f_g * c + i_g * g_g
                h = o_g * jnp.tanh(c)
                hs.append(h)                                      # stays in vregs

            hn_ref[l] = h
            cn_ref[l] = c
            x = jnp.concatenate(hs, axis=0)                       # (T*Bp, H) vreg-resident

        # FC epilogue: one (T*Bp, H) @ (H, V) matmul.
        logits_ref[...] = (jnp.dot(x, wfc_ref[...], preferred_element_type=jnp.float32)
                           + bfc_ref[...])

    return kernel


# ----------------------------- wrapper ---------------------------------------
def lstm_lm_forward(tokens, params, hidden=None):
    """tokens: (B, T) int32. Returns (logits (B,T,V), (h_n, c_n) each (L,B,H))."""
    B, T = tokens.shape
    E, H, V, L = EMBED_DIM, HIDDEN_DIM, VOCAB_SIZE, NUM_LAYERS
    Bp = ((B + 7) // 8) * 8                                        # pad batch to sublane tile

    if hidden is None:
        h0 = jnp.zeros((L, Bp, H), jnp.float32)
        c0 = jnp.zeros((L, Bp, H), jnp.float32)
    else:
        h0, c0 = hidden
        h0 = jnp.pad(h0.astype(jnp.float32), ((0, 0), (0, Bp - B), (0, 0)))
        c0 = jnp.pad(c0.astype(jnp.float32), ((0, 0), (0, Bp - B), (0, 0)))

    weight_args = []
    for l in range(L):
        b_comb = (params[f"b_ih_{l}"] + params[f"b_hh_{l}"]).reshape(1, 4 * H)
        weight_args += [params[f"w_ih_{l}"], params[f"w_hh_{l}"], b_comb]

    # (V, 1, E): dynamic gather indexes the (untiled) leading axis only.
    emb3 = params["emb"].astype(jnp.float32).reshape(V, 1, E)

    n_vmem_inputs = 1 + 3 * L + 2 + 2                              # emb, layers, h0/c0, fc
    in_specs = ([pl.BlockSpec(memory_space=pltpu.MemorySpace.SMEM)]
                + [pl.BlockSpec(memory_space=pltpu.MemorySpace.VMEM)] * n_vmem_inputs)

    logits_tm, h_n, c_n = pl.pallas_call(
        make_fused_kernel(T, B, Bp, E, H, V, L),
        out_shape=(jax.ShapeDtypeStruct((T * Bp, V), jnp.float32),
                   jax.ShapeDtypeStruct((L, Bp, H), jnp.float32),
                   jax.ShapeDtypeStruct((L, Bp, H), jnp.float32)),
        in_specs=in_specs,
        scratch_shapes=[pltpu.VMEM((T * Bp, E), jnp.float32)],
    )(tokens.astype(jnp.int32), emb3, *weight_args, h0, c0,
      params["w_fc"], params["b_fc"].reshape(1, V))

    # Tiny post-processing on the padded outputs (fused by XLA under jit).
    logits = jnp.transpose(logits_tm.reshape(T, Bp, V)[:, :B, :], (1, 0, 2))   # (B, T, V)
    return logits, (h_n[:, :B, :], c_n[:, :B, :])


# ----------------------------- pure-JAX reference ----------------------------
def lstm_lm_reference(tokens, params, hidden=None):
    B, T = tokens.shape
    H, L = HIDDEN_DIM, NUM_LAYERS
    emb = jnp.take(params["emb"], tokens, axis=0)
    x = jnp.transpose(emb, (1, 0, 2)).astype(jnp.float32)
    if hidden is None:
        h0 = jnp.zeros((L, B, H), jnp.float32)
        c0 = jnp.zeros((L, B, H), jnp.float32)
    else:
        h0, c0 = hidden
    h_n, c_n = [], []
    for l in range(L):
        b = (params[f"b_ih_{l}"] + params[f"b_hh_{l}"]).reshape(1, 4 * H)
        h, c = h0[l], c0[l]
        ys = []
        for t in range(T):
            g = x[t] @ params[f"w_ih_{l}"] + h @ params[f"w_hh_{l}"] + b
            i = jax.nn.sigmoid(g[:, :H])
            f = jax.nn.sigmoid(g[:, H:2 * H])
            gg = jnp.tanh(g[:, 2 * H:3 * H])
            o = jax.nn.sigmoid(g[:, 3 * H:])
            c = f * c + i * gg
            h = o * jnp.tanh(c)
            ys.append(h)
        x = jnp.stack(ys, axis=0)
        h_n.append(h)
        c_n.append(c)
    out = jnp.transpose(x, (1, 0, 2)).reshape(B * T, H)
    logits = (out @ params["w_fc"] + params["b_fc"].reshape(1, -1)).reshape(B, T, -1)
    return logits, (jnp.stack(h_n, 0), jnp.stack(c_n, 0))


# ----------------------------- parameter init --------------------------------
def init_params(key):
    params = {}
    k = 1.0 / np.sqrt(HIDDEN_DIM)
    keys = jax.random.split(key, 4 * NUM_LAYERS + 3)
    ki = 0
    params["emb"] = jax.random.normal(keys[ki], (VOCAB_SIZE, EMBED_DIM), jnp.float32); ki += 1
    for l in range(NUM_LAYERS):
        d_in = EMBED_DIM if l == 0 else HIDDEN_DIM
        params[f"w_ih_{l}"] = jax.random.uniform(keys[ki], (d_in, 4 * HIDDEN_DIM),
                                                 jnp.float32, -k, k); ki += 1
        params[f"w_hh_{l}"] = jax.random.uniform(keys[ki], (HIDDEN_DIM, 4 * HIDDEN_DIM),
                                                 jnp.float32, -k, k); ki += 1
        params[f"b_ih_{l}"] = jax.random.uniform(keys[ki], (4 * HIDDEN_DIM,),
                                                 jnp.float32, -k, k); ki += 1
        params[f"b_hh_{l}"] = jax.random.uniform(keys[ki], (4 * HIDDEN_DIM,),
                                                 jnp.float32, -k, k); ki += 1
    params["w_fc"] = jax.random.uniform(keys[ki], (HIDDEN_DIM, VOCAB_SIZE),
                                        jnp.float32, -k, k); ki += 1
    params["b_fc"] = jax.random.uniform(keys[ki], (VOCAB_SIZE,),
                                        jnp.float32, -k, k); ki += 1
    return params


# ----------------------------- main -------------------------------------------
if __name__ == "__main__":
    key = jax.random.PRNGKey(0)
    pkey, tkey = jax.random.split(key)
    params = init_params(pkey)
    tokens = jax.random.randint(tkey, (BATCH, SEQ), 0, VOCAB_SIZE, dtype=jnp.int32)

    fwd = jax.jit(lstm_lm_forward)
    logits, (h_n, c_n) = fwd(tokens, params)
    jax.block_until_ready((logits, h_n, c_n))

    ref_logits, (ref_h, ref_c) = lstm_lm_reference(tokens, params)
    np.testing.assert_allclose(np.asarray(logits), np.asarray(ref_logits),
                               rtol=1e-5, atol=1e-5)
    np.testing.assert_allclose(np.asarray(h_n), np.asarray(ref_h), rtol=1e-5, atol=1e-5)
    np.testing.assert_allclose(np.asarray(c_n), np.asarray(ref_c), rtol=1e-5, atol=1e-5)

    assert logits.shape == (BATCH, SEQ, VOCAB_SIZE)
    assert h_n.shape == (NUM_LAYERS, BATCH, HIDDEN_DIM)
    assert c_n.shape == (NUM_LAYERS, BATCH, HIDDEN_DIM)
    print("KERNEL_OK")
</pallas_src>

<mosaic_0001>
module attributes {stable_mosaic.version = 11 : i64} {
  func.func @kernel(%arg0: memref<2x8xi32, #tpu.memory_space<smem>>, %arg1: memref<64x1x32xf32, #tpu.memory_space<vmem>>, %arg2: memref<32x128xf32, #tpu.memory_space<vmem>>, %arg3: memref<32x128xf32, #tpu.memory_space<vmem>>, %arg4: memref<1x128xf32, #tpu.memory_space<vmem>>, %arg5: memref<32x128xf32, #tpu.memory_space<vmem>>, %arg6: memref<32x128xf32, #tpu.memory_space<vmem>>, %arg7: memref<1x128xf32, #tpu.memory_space<vmem>>, %arg8: memref<2x8x32xf32, #tpu.memory_space<vmem>>, %arg9: memref<2x8x32xf32, #tpu.memory_space<vmem>>, %arg10: memref<32x64xf32, #tpu.memory_space<vmem>>, %arg11: memref<1x64xf32, #tpu.memory_space<vmem>>, %arg12: memref<64x64xf32, #tpu.memory_space<vmem>>, %arg13: memref<2x8x32xf32, #tpu.memory_space<vmem>>, %arg14: memref<2x8x32xf32, #tpu.memory_space<vmem>>, %arg15: memref<64x32xf32, #tpu.memory_space<vmem>>) attributes {dimension_semantics = [], scalar_prefetch = 0 : i64, scratch_operands = 1 : i64, tpu.core_type = #tpu.core_type<tc>} {
    %cst = arith.constant 0.000000e+00 : f32
    %0 = vector.broadcast %cst : f32 to vector<64x32xf32>
    %c0 = arith.constant 0 : index
    %c0_0 = arith.constant 0 : index
    %1 = vector.load %arg15[%c0, %c0_0] : memref<64x32xf32, #tpu.memory_space<vmem>>, vector<64x32xf32>
    tpu.vector_store %arg15[%c0, %c0_0], %0 {strides = array<i32>} : memref<64x32xf32, #tpu.memory_space<vmem>>, vector<64x32xf32>,
    %c0_1 = arith.constant 0 : index
    %c0_2 = arith.constant 0 : index
    %2 = memref.load %arg0[%c0_1, %c0_2] : memref<2x8xi32, #tpu.memory_space<smem>>
    %3 = arith.index_cast %2 : i32 to index
    %c0_3 = arith.constant 0 : index
    %c0_4 = arith.constant 0 : index
    %4 = vector.load %arg1[%3, %c0_3, %c0_4] : memref<64x1x32xf32, #tpu.memory_space<vmem>>, vector<1x1x32xf32>
    %5 = vector.shape_cast %4 : vector<1x1x32xf32> to vector<1x32xf32>
    %c0_5 = arith.constant 0 : index
    %c0_6 = arith.constant 0 : index
    %6 = vector.load %arg15[%c0_5, %c0_6] : memref<64x32xf32, #tpu.memory_space<vmem>>, vector<1x32xf32>
    tpu.vector_store %arg15[%c0_5, %c0_6], %5 {strides = array<i32>} : memref<64x32xf32, #tpu.memory_space<vmem>>, vector<1x32xf32>,
    %c1 = arith.constant 1 : index
    %c0_7 = arith.constant 0 : index
    %7 = memref.load %arg0[%c1, %c0_7] : memref<2x8xi32, #tpu.memory_space<smem>>
    %8 = arith.index_cast %7 : i32 to index
    %c0_8 = arith.constant 0 : index
    %c0_9 = arith.constant 0 : index
    %9 = vector.load %arg1[%8, %c0_8, %c0_9] : memref<64x1x32xf32, #tpu.memory_space<vmem>>, vector<1x1x32xf32>
    %10 = vector.shape_cast %9 : vector<1x1x32xf32> to vector<1x32xf32>
    %c1_10 = arith.constant 1 : index
    %c0_11 = arith.constant 0 : index
    %11 = vector.load %arg15[%c1_10, %c0_11] : memref<64x32xf32, #tpu.memory_space<vmem>>, vector<1x32xf32>
    tpu.vector_store %arg15[%c1_10, %c0_11], %10 {strides = array<i32>} : memref<64x32xf32, #tpu.memory_space<vmem>>, vector<1x32xf32>,
    %c0_12 = arith.constant 0 : index
    %c1_13 = arith.constant 1 : index
    %12 = memref.load %arg0[%c0_12, %c1_13] : memref<2x8xi32, #tpu.memory_space<smem>>
    %13 = arith.index_cast %12 : i32 to index
    %c0_14 = arith.constant 0 : index
    %c0_15 = arith.constant 0 : index
    %14 = vector.load %arg1[%13, %c0_14, %c0_15] : memref<64x1x32xf32, #tpu.memory_space<vmem>>, vector<1x1x32xf32>
    %15 = vector.shape_cast %14 : vector<1x1x32xf32> to vector<1x32xf32>
    %c8 = arith.constant 8 : index
    %c0_16 = arith.constant 0 : index
    %16 = vector.load %arg15[%c8, %c0_16] : memref<64x32xf32, #tpu.memory_space<vmem>>, vector<1x32xf32>
    tpu.vector_store %arg15[%c8, %c0_16], %15 {strides = array<i32>} : memref<64x32xf32, #tpu.memory_space<vmem>>, vector<1x32xf32>,
    %c1_17 = arith.constant 1 : index
    %c1_18 = arith.constant 1 : index
    %17 = memref.load %arg0[%c1_17, %c1_18] : memref<2x8xi32, #tpu.memory_space<smem>>
    %18 = arith.index_cast %17 : i32 to index
    %c0_19 = arith.constant 0 : index
    %c0_20 = arith.constant 0 : index
    %19 = vector.load %arg1[%18, %c0_19, %c0_20] : memref<64x1x32xf32, #tpu.memory_space<vmem>>, vector<1x1x32xf32>
    %20 = vector.shape_cast %19 : vector<1x1x32xf32> to vector<1x32xf32>
    %c9 = arith.constant 9 : index
    %c0_21 = arith.constant 0 : index
    %21 = vector.load %arg15[%c9, %c0_21] : memref<64x32xf32, #tpu.memory_space<vmem>>, vector<1x32xf32>
    tpu.vector_store %arg15[%c9, %c0_21], %20 {strides = array<i32>} : memref<64x32xf32, #tpu.memory_space<vmem>>, vector<1x32xf32>,
    %c0_22 = arith.constant 0 : index
    %c2 = arith.constant 2 : index
    %22 = memref.load %arg0[%c0_22, %c2] : memref<2x8xi32, #tpu.memory_space<smem>>
    %23 = arith.index_cast %22 : i32 to index
    %c0_23 = arith.constant 0 : index
    %c0_24 = arith.constant 0 : index
    %24 = vector.load %arg1[%23, %c0_23, %c0_24] : memref<64x1x32xf32, #tpu.memory_space<vmem>>, vector<1x1x32xf32>
    %25 = vector.shape_cast %24 : vector<1x1x32xf32> to vector<1x32xf32>
    %c16 = arith.constant 16 : index
    %c0_25 = arith.constant 0 : index
    %26 = vector.load %arg15[%c16, %c0_25] : memref<64x32xf32, #tpu.memory_space<vmem>>, vector<1x32xf32>
    tpu.vector_store %arg15[%c16, %c0_25], %25 {strides = array<i32>} : memref<64x32xf32, #tpu.memory_space<vmem>>, vector<1x32xf32>,
    %c1_26 = arith.constant 1 : index
    %c2_27 = arith.constant 2 : index
    %27 = memref.load %arg0[%c1_26, %c2_27] : memref<2x8xi32, #tpu.memory_space<smem>>
    %28 = arith.index_cast %27 : i32 to index
    %c0_28 = arith.constant 0 : index
    %c0_29 = arith.constant 0 : index
    %29 = vector.load %arg1[%28, %c0_28, %c0_29] : memref<64x1x32xf32, #tpu.memory_space<vmem>>, vector<1x1x32xf32>
    %30 = vector.shape_cast %29 : vector<1x1x32xf32> to vector<1x32xf32>
    %c17 = arith.constant 17 : index
    %c0_30 = arith.constant 0 : index
    %31 = vector.load %arg15[%c17, %c0_30] : memref<64x32xf32, #tpu.memory_space<vmem>>, vector<1x32xf32>
    tpu.vector_store %arg15[%c17, %c0_30], %30 {strides = array<i32>} : memref<64x32xf32, #tpu.memory_space<vmem>>, vector<1x32xf32>,
    %c0_31 = arith.constant 0 : index
    %c3 = arith.constant 3 : index
    %32 = memref.load %arg0[%c0_31, %c3] : memref<2x8xi32, #tpu.memory_space<smem>>
    %33 = arith.index_cast %32 : i32 to index
    %c0_32 = arith.constant 0 : index
    %c0_33 = arith.constant 0 : index
    %34 = vector.load %arg1[%33, %c0_32, %c0_33] : memref<64x1x32xf32, #tpu.memory_space<vmem>>, vector<1x1x32xf32>
    %35 = vector.shape_cast %34 : vector<1x1x32xf32> to vector<1x32xf32>
    %c24 = arith.constant 24 : index
    %c0_34 = arith.constant 0 : index
    %36 = vector.load %arg15[%c24, %c0_34] : memref<64x32xf32, #tpu.memory_space<vmem>>, vector<1x32xf32>
    tpu.vector_store %arg15[%c24, %c0_34], %35 {strides = array<i32>} : memref<64x32xf32, #tpu.memory_space<vmem>>, vector<1x32xf32>,
    %c1_35 = arith.constant 1 : index
    %c3_36 = arith.constant 3 : index
    %37 = memref.load %arg0[%c1_35, %c3_36] : memref<2x8xi32, #tpu.memory_space<smem>>
    %38 = arith.index_cast %37 : i32 to index
    %c0_37 = arith.constant 0 : index
    %c0_38 = arith.constant 0 : index
    %39 = vector.load %arg1[%38, %c0_37, %c0_38] : memref<64x1x32xf32, #tpu.memory_space<vmem>>, vector<1x1x32xf32>
    %40 = vector.shape_cast %39 : vector<1x1x32xf32> to vector<1x32xf32>
    %c25 = arith.constant 25 : index
    %c0_39 = arith.constant 0 : index
    %41 = vector.load %arg15[%c25, %c0_39] : memref<64x32xf32, #tpu.memory_space<vmem>>, vector<1x32xf32>
    tpu.vector_store %arg15[%c25, %c0_39], %40 {strides = array<i32>} : memref<64x32xf32, #tpu.memory_space<vmem>>, vector<1x32xf32>,
    %c0_40 = arith.constant 0 : index
    %c4 = arith.constant 4 : index
    %42 = memref.load %arg0[%c0_40, %c4] : memref<2x8xi32, #tpu.memory_space<smem>>
    %43 = arith.index_cast %42 : i32 to index
    %c0_41 = arith.constant 0 : index
    %c0_42 = arith.constant 0 : index
    %44 = vector.load %arg1[%43, %c0_41, %c0_42] : memref<64x1x32xf32, #tpu.memory_space<vmem>>, vector<1x1x32xf32>
    %45 = vector.shape_cast %44 : vector<1x1x32xf32> to vector<1x32xf32>
    %c32 = arith.constant 32 : index
    %c0_43 = arith.constant 0 : index
    %46 = vector.load %arg15[%c32, %c0_43] : memref<64x32xf32, #tpu.memory_space<vmem>>, vector<1x32xf32>
    tpu.vector_store %arg15[%c32, %c0_43], %45 {strides = array<i32>} : memref<64x32xf32, #tpu.memory_space<vmem>>, vector<1x32xf32>,
    %c1_44 = arith.constant 1 : index
    %c4_45 = arith.constant 4 : index
    %47 = memref.load %arg0[%c1_44, %c4_45] : memref<2x8xi32, #tpu.memory_space<smem>>
    %48 = arith.index_cast %47 : i32 to index
    %c0_46 = arith.constant 0 : index
    %c0_47 = arith.constant 0 : index
    %49 = vector.load %arg1[%48, %c0_46, %c0_47] : memref<64x1x32xf32, #tpu.memory_space<vmem>>, vector<1x1x32xf32>
    %50 = vector.shape_cast %49 : vector<1x1x32xf32> to vector<1x32xf32>
    %c33 = arith.constant 33 : index
    %c0_48 = arith.constant 0 : index
    %51 = vector.load %arg15[%c33, %c0_48] : memref<64x32xf32, #tpu.memory_space<vmem>>, vector<1x32xf32>
    tpu.vector_store %arg15[%c33, %c0_48], %50 {strides = array<i32>} : memref<64x32xf32, #tpu.memory_space<vmem>>, vector<1x32xf32>,
    %c0_49 = arith.constant 0 : index
    %c5 = arith.constant 5 : index
    %52 = memref.load %arg0[%c0_49, %c5] : memref<2x8xi32, #tpu.memory_space<smem>>
    %53 = arith.index_cast %52 : i32 to index
    %c0_50 = arith.constant 0 : index
    %c0_51 = arith.constant 0 : index
    %54 = vector.load %arg1[%53, %c0_50, %c0_51] : memref<64x1x32xf32, #tpu.memory_space<vmem>>, vector<1x1x32xf32>
    %55 = vector.shape_cast %54 : vector<1x1x32xf32> to vector<1x32xf32>
    %c40 = arith.constant 40 : index
    %c0_52 = arith.constant 0 : index
    %56 = vector.load %arg15[%c40, %c0_52] : memref<64x32xf32, #tpu.memory_space<vmem>>, vector<1x32xf32>
    tpu.vector_store %arg15[%c40, %c0_52], %55 {strides = array<i32>} : memref<64x32xf32, #tpu.memory_space<vmem>>, vector<1x32xf32>,
    %c1_53 = arith.constant 1 : index
    %c5_54 = arith.constant 5 : index
    %57 = memref.load %arg0[%c1_53, %c5_54] : memref<2x8xi32, #tpu.memory_space<smem>>
    %58 = arith.index_cast %57 : i32 to index
    %c0_55 = arith.constant 0 : index
    %c0_56 = arith.constant 0 : index
    %59 = vector.load %arg1[%58, %c0_55, %c0_56] : memref<64x1x32xf32, #tpu.memory_space<vmem>>, vector<1x1x32xf32>
    %60 = vector.shape_cast %59 : vector<1x1x32xf32> to vector<1x32xf32>
    %c41 = arith.constant 41 : index
    %c0_57 = arith.constant 0 : index
    %61 = vector.load %arg15[%c41, %c0_57] : memref<64x32xf32, #tpu.memory_space<vmem>>, vector<1x32xf32>
    tpu.vector_store %arg15[%c41, %c0_57], %60 {strides = array<i32>} : memref<64x32xf32, #tpu.memory_space<vmem>>, vector<1x32xf32>,
    %c0_58 = arith.constant 0 : index
    %c6 = arith.constant 6 : index
    %62 = memref.load %arg0[%c0_58, %c6] : memref<2x8xi32, #tpu.memory_space<smem>>
    %63 = arith.index_cast %62 : i32 to index
    %c0_59 = arith.constant 0 : index
    %c0_60 = arith.constant 0 : index
    %64 = vector.load %arg1[%63, %c0_59, %c0_60] : memref<64x1x32xf32, #tpu.memory_space<vmem>>, vector<1x1x32xf32>
    %65 = vector.shape_cast %64 : vector<1x1x32xf32> to vector<1x32xf32>
    %c48 = arith.constant 48 : index
    %c0_61 = arith.constant 0 : index
    %66 = vector.load %arg15[%c48, %c0_61] : memref<64x32xf32, #tpu.memory_space<vmem>>, vector<1x32xf32>
    tpu.vector_store %arg15[%c48, %c0_61], %65 {strides = array<i32>} : memref<64x32xf32, #tpu.memory_space<vmem>>, vector<1x32xf32>,
    %c1_62 = arith.constant 1 : index
    %c6_63 = arith.constant 6 : index
    %67 = memref.load %arg0[%c1_62, %c6_63] : memref<2x8xi32, #tpu.memory_space<smem>>
    %68 = arith.index_cast %67 : i32 to index
    %c0_64 = arith.constant 0 : index
    %c0_65 = arith.constant 0 : index
    %69 = vector.load %arg1[%68, %c0_64, %c0_65] : memref<64x1x32xf32, #tpu.memory_space<vmem>>, vector<1x1x32xf32>
    %70 = vector.shape_cast %69 : vector<1x1x32xf32> to vector<1x32xf32>
    %c49 = arith.constant 49 : index
    %c0_66 = arith.constant 0 : index
    %71 = vector.load %arg15[%c49, %c0_66] : memref<64x32xf32, #tpu.memory_space<vmem>>, vector<1x32xf32>
    tpu.vector_store %arg15[%c49, %c0_66], %70 {strides = array<i32>} : memref<64x32xf32, #tpu.memory_space<vmem>>, vector<1x32xf32>,
    %c0_67 = arith.constant 0 : index
    %c7 = arith.constant 7 : index
    %72 = memref.load %arg0[%c0_67, %c7] : memref<2x8xi32, #tpu.memory_space<smem>>
    %73 = arith.index_cast %72 : i32 to index
    %c0_68 = arith.constant 0 : index
    %c0_69 = arith.constant 0 : index
    %74 = vector.load %arg1[%73, %c0_68, %c0_69] : memref<64x1x32xf32, #tpu.memory_space<vmem>>, vector<1x1x32xf32>
    %75 = vector.shape_cast %74 : vector<1x1x32xf32> to vector<1x32xf32>
    %c56 = arith.constant 56 : index
    %c0_70 = arith.constant 0 : index
    %76 = vector.load %arg15[%c56, %c0_70] : memref<64x32xf32, #tpu.memory_space<vmem>>, vector<1x32xf32>
    tpu.vector_store %arg15[%c56, %c0_70], %75 {strides = array<i32>} : memref<64x32xf32, #tpu.memory_space<vmem>>, vector<1x32xf32>,
    %c1_71 = arith.constant 1 : index
    %c7_72 = arith.constant 7 : index
    %77 = memref.load %arg0[%c1_71, %c7_72] : memref<2x8xi32, #tpu.memory_space<smem>>
    %78 = arith.index_cast %77 : i32 to index
    %c0_73 = arith.constant 0 : index
    %c0_74 = arith.constant 0 : index
    %79 = vector.load %arg1[%78, %c0_73, %c0_74] : memref<64x1x32xf32, #tpu.memory_space<vmem>>, vector<1x1x32xf32>
    %80 = vector.shape_cast %79 : vector<1x1x32xf32> to vector<1x32xf32>
    %c57 = arith.constant 57 : index
    %c0_75 = arith.constant 0 : index
    %81 = vector.load %arg15[%c57, %c0_75] : memref<64x32xf32, #tpu.memory_space<vmem>>, vector<1x32xf32>
    tpu.vector_store %arg15[%c57, %c0_75], %80 {strides = array<i32>} : memref<64x32xf32, #tpu.memory_space<vmem>>, vector<1x32xf32>,
    %c0_76 = arith.constant 0 : index
    %c0_77 = arith.constant 0 : index
    %82 = vector.load %arg15[%c0_76, %c0_77] : memref<64x32xf32, #tpu.memory_space<vmem>>, vector<64x32xf32>
    %c0_78 = arith.constant 0 : index
    %c0_79 = arith.constant 0 : index
    %83 = vector.load %arg2[%c0_78, %c0_79] : memref<32x128xf32, #tpu.memory_space<vmem>>, vector<32x128xf32>
    %cst_80 = arith.constant dense<0.000000e+00> : vector<64x128xf32>
    %84 = tpu.matmul %82, %83, %cst_80 {dimension_numbers = #tpu.dot_dimension_numbers<[1], [0], [0], [1], [0, 0, 1, 1], [], []>} : vector<64x32xf32>, vector<32x128xf32>, vector<64x128xf32> -> vector<64x128xf32>
    %c0_81 = arith.constant 0 : index
    %c0_82 = arith.constant 0 : index
    %85 = vector.load %arg4[%c0_81, %c0_82] : memref<1x128xf32, #tpu.memory_space<vmem>>, vector<1x128xf32>
    %86 = vector.broadcast %85 : vector<1x128xf32> to vector<64x128xf32>
    %87 = arith.addf %84, %86 : vector<64x128xf32>
    %c0_83 = arith.constant 0 : index
    %c0_84 = arith.constant 0 : index
    %88 = vector.load %arg3[%c0_83, %c0_84] : memref<32x128xf32, #tpu.memory_space<vmem>>, vector<32x128xf32>
    %c0_85 = arith.constant 0 : index
    %c0_86 = arith.constant 0 : index
    %c0_87 = arith.constant 0 : index
    %89 = vector.load %arg8[%c0_85, %c0_86, %c0_87] : memref<2x8x32xf32, #tpu.memory_space<vmem>>, vector<1x8x32xf32>
    %90 = vector.shape_cast %89 : vector<1x8x32xf32> to vector<8x32xf32>
    %c0_88 = arith.constant 0 : index
    %c0_89 = arith.constant 0 : index
    %c0_90 = arith.constant 0 : index
    %91 = vector.load %arg9[%c0_88, %c0_89, %c0_90] : memref<2x8x32xf32, #tpu.memory_space<vmem>>, vector<1x8x32xf32>
    %92 = vector.shape_cast %91 : vector<1x8x32xf32> to vector<8x32xf32>
    %93 = vector.extract_strided_slice %87 {offsets = [0, 0], sizes = [8, 128], strides = [1, 1]} : vector<64x128xf32> to vector<8x128xf32>
    %cst_91 = arith.constant dense<0.000000e+00> : vector<8x128xf32>
    %94 = tpu.matmul %90, %88, %cst_91 {dimension_numbers = #tpu.dot_dimension_numbers<[1], [0], [0], [1], [0, 0, 1, 1], [], []>} : vector<8x32xf32>, vector<32x128xf32>, vector<8x128xf32> -> vector<8x128xf32>
    %95 = arith.addf %93, %94 : vector<8x128xf32>
    %96 = arith.negf %95 : vector<8x128xf32>
    %97 = math.exp %96 : vector<8x128xf32>
    %cst_92 = arith.constant 1.000000e+00 : f32
    %98 = vector.broadcast %cst_92 : f32 to vector<8x128xf32>
    %99 = arith.addf %98, %97 : vector<8x128xf32>
    %100 = arith.divf %98, %99 : vector<8x128xf32>
    %101 = math.tanh %95 : vector<8x128xf32>
    %102 = vector.extract_strided_slice %100 {offsets = [0, 0], sizes = [8, 32], strides = [1, 1]} : vector<8x128xf32> to vector<8x32xf32>
    %103 = vector.extract_strided_slice %100 {offsets = [0, 32], sizes = [8, 32], strides = [1, 1]} : vector<8x128xf32> to vector<8x32xf32>
    %104 = vector.extract_strided_slice %101 {offsets = [0, 64], sizes = [8, 32], strides = [1, 1]} : vector<8x128xf32> to vector<8x32xf32>
    %105 = vector.extract_strided_slice %100 {offsets = [0, 96], sizes = [8, 32], strides = [1, 1]} : vector<8x128xf32> to vector<8x32xf32>
    %106 = arith.mulf %103, %92 : vector<8x32xf32>
    %107 = arith.mulf %102, %104 : vector<8x32xf32>
    %108 = arith.addf %106, %107 : vector<8x32xf32>
    %109 = math.tanh %108 : vector<8x32xf32>
    %110 = arith.mulf %105, %109 : vector<8x32xf32>
    %111 = vector.extract_strided_slice %87 {offsets = [8, 0], sizes = [8, 128], strides = [1, 1]} : vector<64x128xf32> to vector<8x128xf32>
    %cst_93 = arith.constant dense<0.000000e+00> : vector<8x128xf32>
    %112 = tpu.matmul %110, %88, %cst_93 {dimension_numbers = #tpu.dot_dimension_numbers<[1], [0], [0], [1], [0, 0, 1, 1], [], []>} : vector<8x32xf32>, vector<32x128xf32>, vector<8x128xf32> -> vector<8x128xf32>
    %113 = arith.addf %111, %112 : vector<8x128xf32>
    %114 = arith.negf %113 : vector<8x128xf32>
    %115 = math.exp %114 : vector<8x128xf32>
    %cst_94 = arith.constant 1.000000e+00 : f32
    %116 = vector.broadcast %cst_94 : f32 to vector<8x128xf32>
    %117 = arith.addf %116, %115 : vector<8x128xf32>
    %118 = arith.divf %116, %117 : vector<8x128xf32>
    %119 = math.tanh %113 : vector<8x128xf32>
    %120 = vector.extract_strided_slice %118 {offsets = [0, 0], sizes = [8, 32], strides = [1, 1]} : vector<8x128xf32> to vector<8x32xf32>
    %121 = vector.extract_strided_slice %118 {offsets = [0, 32], sizes = [8, 32], strides = [1, 1]} : vector<8x128xf32> to vector<8x32xf32>
    %122 = vector.extract_strided_slice %119 {offsets = [0, 64], sizes = [8, 32], strides = [1, 1]} : vector<8x128xf32> to vector<8x32xf32>
    %123 = vector.extract_strided_slice %118 {offsets = [0, 96], sizes = [8, 32], strides = [1, 1]} : vector<8x128xf32> to vector<8x32xf32>
    %124 = arith.mulf %121, %108 : vector<8x32xf32>
    %125 = arith.mulf %120, %122 : vector<8x32xf32>
    %126 = arith.addf %124, %125 : vector<8x32xf32>
    %127 = math.tanh %126 : vector<8x32xf32>
    %128 = arith.mulf %123, %127 : vector<8x32xf32>
    %129 = vector.extract_strided_slice %87 {offsets = [16, 0], sizes = [8, 128], strides = [1, 1]} : vector<64x128xf32> to vector<8x128xf32>
    %cst_95 = arith.constant dense<0.000000e+00> : vector<8x128xf32>
    %130 = tpu.matmul %128, %88, %cst_95 {dimension_numbers = #tpu.dot_dimension_numbers<[1], [0], [0], [1], [0, 0, 1, 1], [], []>} : vector<8x32xf32>, vector<32x128xf32>, vector<8x128xf32> -> vector<8x128xf32>
    %131 = arith.addf %129, %130 : vector<8x128xf32>
    %132 = arith.negf %131 : vector<8x128xf32>
    %133 = math.exp %132 : vector<8x128xf32>
    %cst_96 = arith.constant 1.000000e+00 : f32
    %134 = vector.broadcast %cst_96 : f32 to vector<8x128xf32>
    %135 = arith.addf %134, %133 : vector<8x128xf32>
    %136 = arith.divf %134, %135 : vector<8x128xf32>
    %137 = math.tanh %131 : vector<8x128xf32>
    %138 = vector.extract_strided_slice %136 {offsets = [0, 0], sizes = [8, 32], strides = [1, 1]} : vector<8x128xf32> to vector<8x32xf32>
    %139 = vector.extract_strided_slice %136 {offsets = [0, 32], sizes = [8, 32], strides = [1, 1]} : vector<8x128xf32> to vector<8x32xf32>
    %140 = vector.extract_strided_slice %137 {offsets = [0, 64], sizes = [8, 32], strides = [1, 1]} : vector<8x128xf32> to vector<8x32xf32>
    %141 = vector.extract_strided_slice %136 {offsets = [0, 96], sizes = [8, 32], strides = [1, 1]} : vector<8x128xf32> to vector<8x32xf32>
    %142 = arith.mulf %139, %126 : vector<8x32xf32>
    %143 = arith.mulf %138, %140 : vector<8x32xf32>
    %144 = arith.addf %142, %143 : vector<8x32xf32>
    %145 = math.tanh %144 : vector<8x32xf32>
    %146 = arith.mulf %141, %145 : vector<8x32xf32>
    %147 = vector.extract_strided_slice %87 {offsets = [24, 0], sizes = [8, 128], strides = [1, 1]} : vector<64x128xf32> to vector<8x128xf32>
    %cst_97 = arith.constant dense<0.000000e+00> : vector<8x128xf32>
    %148 = tpu.matmul %146, %88, %cst_97 {dimension_numbers = #tpu.dot_dimension_numbers<[1], [0], [0], [1], [0, 0, 1, 1], [], []>} : vector<8x32xf32>, vector<32x128xf32>, vector<8x128xf32> -> vector<8x128xf32>
    %149 = arith.addf %147, %148 : vector<8x128xf32>
    %150 = arith.negf %149 : vector<8x128xf32>
    %151 = math.exp %150 : vector<8x128xf32>
    %cst_98 = arith.constant 1.000000e+00 : f32
    %152 = vector.broadcast %cst_98 : f32 to vector<8x128xf32>
    %153 = arith.addf %152, %151 : vector<8x128xf32>
    %154 = arith.divf %152, %153 : vector<8x128xf32>
    %155 = math.tanh %149 : vector<8x128xf32>
    %156 = vector.extract_strided_slice %154 {offsets = [0, 0], sizes = [8, 32], strides = [1, 1]} : vector<8x128xf32> to vector<8x32xf32>
    %157 = vector.extract_strided_slice %154 {offsets = [0, 32], sizes = [8, 32], strides = [1, 1]} : vector<8x128xf32> to vector<8x32xf32>
    %158 = vector.extract_strided_slice %155 {offsets = [0, 64], sizes = [8, 32], strides = [1, 1]} : vector<8x128xf32> to vector<8x32xf32>
    %159 = vector.extract_strided_slice %154 {offsets = [0, 96], sizes = [8, 32], strides = [1, 1]} : vector<8x128xf32> to vector<8x32xf32>
    %160 = arith.mulf %157, %144 : vector<8x32xf32>
    %161 = arith.mulf %156, %158 : vector<8x32xf32>
    %162 = arith.addf %160, %161 : vector<8x32xf32>
    %163 = math.tanh %162 : vector<8x32xf32>
    %164 = arith.mulf %159, %163 : vector<8x32xf32>
    %165 = vector.extract_strided_slice %87 {offsets = [32, 0], sizes = [8, 128], strides = [1, 1]} : vector<64x128xf32> to vector<8x128xf32>
    %cst_99 = arith.constant dense<0.000000e+00> : vector<8x128xf32>
    %166 = tpu.matmul %164, %88, %cst_99 {dimension_numbers = #tpu.dot_dimension_numbers<[1], [0], [0], [1], [0, 0, 1, 1], [], []>} : vector<8x32xf32>, vector<32x128xf32>, vector<8x128xf32> -> vector<8x128xf32>
    %167 = arith.addf %165, %166 : vector<8x128xf32>
    %168 = arith.negf %167 : vector<8x128xf32>
    %169 = math.exp %168 : vector<8x128xf32>
    %cst_100 = arith.constant 1.000000e+00 : f32
    %170 = vector.broadcast %cst_100 : f32 to vector<8x128xf32>
    %171 = arith.addf %170, %169 : vector<8x128xf32>
    %172 = arith.divf %170, %171 : vector<8x128xf32>
    %173 = math.tanh %167 : vector<8x128xf32>
    %174 = vector.extract_strided_slice %172 {offsets = [0, 0], sizes = [8, 32], strides = [1, 1]} : vector<8x128xf32> to vector<8x32xf32>
    %175 = vector.extract_strided_slice %172 {offsets = [0, 32], sizes = [8, 32], strides = [1, 1]} : vector<8x128xf32> to vector<8x32xf32>
    %176 = vector.extract_strided_slice %173 {offsets = [0, 64], sizes = [8, 32], strides = [1, 1]} : vector<8x128xf32> to vector<8x32xf32>
    %177 = vector.extract_strided_slice %172 {offsets = [0, 96], sizes = [8, 32], strides = [1, 1]} : vector<8x128xf32> to vector<8x32xf32>
    %178 = arith.mulf %175, %162 : vector<8x32xf32>
    %179 = arith.mulf %174, %176 : vector<8x32xf32>
    %180 = arith.addf %178, %179 : vector<8x32xf32>
    %181 = math.tanh %180 : vector<8x32xf32>
    %182 = arith.mulf %177, %181 : vector<8x32xf32>
    %183 = vector.extract_strided_slice %87 {offsets = [40, 0], sizes = [8, 128], strides = [1, 1]} : vector<64x128xf32> to vector<8x128xf32>
    %cst_101 = arith.constant dense<0.000000e+00> : vector<8x128xf32>
    %184 = tpu.matmul %182, %88, %cst_101 {dimension_numbers = #tpu.dot_dimension_numbers<[1], [0], [0], [1], [0, 0, 1, 1], [], []>} : vector<8x32xf32>, vector<32x128xf32>, vector<8x128xf32> -> vector<8x128xf32>
    %185 = arith.addf %183, %184 : vector<8x128xf32>
    %186 = arith.negf %185 : vector<8x128xf32>
    %187 = math.exp %186 : vector<8x128xf32>
    %cst_102 = arith.constant 1.000000e+00 : f32
    %188 = vector.broadcast %cst_102 : f32 to vector<8x128xf32>
    %189 = arith.addf %188, %187 : vector<8x128xf32>
    %190 = arith.divf %188, %189 : vector<8x128xf32>
    %191 = math.tanh %185 : vector<8x128xf32>
    %192 = vector.extract_strided_slice %190 {offsets = [0, 0], sizes = [8, 32], strides = [1, 1]} : vector<8x128xf32> to vector<8x32xf32>
    %193 = vector.extract_strided_slice %190 {offsets = [0, 32], sizes = [8, 32], strides = [1, 1]} : vector<8x128xf32> to vector<8x32xf32>
    %194 = vector.extract_strided_slice %191 {offsets = [0, 64], sizes = [8, 32], strides = [1, 1]} : vector<8x128xf32> to vector<8x32xf32>
    %195 = vector.extract_strided_slice %190 {offsets = [0, 96], sizes = [8, 32], strides = [1, 1]} : vector<8x128xf32> to vector<8x32xf32>
    %196 = arith.mulf %193, %180 : vector<8x32xf32>
    %197 = arith.mulf %192, %194 : vector<8x32xf32>
    %198 = arith.addf %196, %197 : vector<8x32xf32>
    %199 = math.tanh %198 : vector<8x32xf32>
    %200 = arith.mulf %195, %199 : vector<8x32xf32>
    %201 = vector.extract_strided_slice %87 {offsets = [48, 0], sizes = [8, 128], strides = [1, 1]} : vector<64x128xf32> to vector<8x128xf32>
    %cst_103 = arith.constant dense<0.000000e+00> : vector<8x128xf32>
    %202 = tpu.matmul %200, %88, %cst_103 {dimension_numbers = #tpu.dot_dimension_numbers<[1], [0], [0], [1], [0, 0, 1, 1], [], []>} : vector<8x32xf32>, vector<32x128xf32>, vector<8x128xf32> -> vector<8x128xf32>
    %203 = arith.addf %201, %202 : vector<8x128xf32>
    %204 = arith.negf %203 : vector<8x128xf32>
    %205 = math.exp %204 : vector<8x128xf32>
    %cst_104 = arith.constant 1.000000e+00 : f32
    %206 = vector.broadcast %cst_104 : f32 to vector<8x128xf32>
    %207 = arith.addf %206, %205 : vector<8x128xf32>
    %208 = arith.divf %206, %207 : vector<8x128xf32>
    %209 = math.tanh %203 : vector<8x128xf32>
    %210 = vector.extract_strided_slice %208 {offsets = [0, 0], sizes = [8, 32], strides = [1, 1]} : vector<8x128xf32> to vector<8x32xf32>
    %211 = vector.extract_strided_slice %208 {offsets = [0, 32], sizes = [8, 32], strides = [1, 1]} : vector<8x128xf32> to vector<8x32xf32>
    %212 = vector.extract_strided_slice %209 {offsets = [0, 64], sizes = [8, 32], strides = [1, 1]} : vector<8x128xf32> to vector<8x32xf32>
    %213 = vector.extract_strided_slice %208 {offsets = [0, 96], sizes = [8, 32], strides = [1, 1]} : vector<8x128xf32> to vector<8x32xf32>
    %214 = arith.mulf %211, %198 : vector<8x32xf32>
    %215 = arith.mulf %210, %212 : vector<8x32xf32>
    %216 = arith.addf %214, %215 : vector<8x32xf32>
    %217 = math.tanh %216 : vector<8x32xf32>
    %218 = arith.mulf %213, %217 : vector<8x32xf32>
    %219 = vector.extract_strided_slice %87 {offsets = [56, 0], sizes = [8, 128], strides = [1, 1]} : vector<64x128xf32> to vector<8x128xf32>
    %cst_105 = arith.constant dense<0.000000e+00> : vector<8x128xf32>
    %220 = tpu.matmul %218, %88, %cst_105 {dimension_numbers = #tpu.dot_dimension_numbers<[1], [0], [0], [1], [0, 0, 1, 1], [], []>} : vector<8x32xf32>, vector<32x128xf32>, vector<8x128xf32> -> vector<8x128xf32>
    %221 = arith.addf %219, %220 : vector<8x128xf32>
    %222 = arith.negf %221 : vector<8x128xf32>
    %223 = math.exp %222 : vector<8x128xf32>
    %cst_106 = arith.constant 1.000000e+00 : f32
    %224 = vector.broadcast %cst_106 : f32 to vector<8x128xf32>
    %225 = arith.addf %224, %223 : vector<8x128xf32>
    %226 = arith.divf %224, %225 : vector<8x128xf32>
    %227 = math.tanh %221 : vector<8x128xf32>
    %228 = vector.extract_strided_slice %226 {offsets = [0, 0], sizes = [8, 32], strides = [1, 1]} : vector<8x128xf32> to vector<8x32xf32>
    %229 = vector.extract_strided_slice %226 {offsets = [0, 32], sizes = [8, 32], strides = [1, 1]} : vector<8x128xf32> to vector<8x32xf32>
    %230 = vector.extract_strided_slice %227 {offsets = [0, 64], sizes = [8, 32], strides = [1, 1]} : vector<8x128xf32> to vector<8x32xf32>
    %231 = vector.extract_strided_slice %226 {offsets = [0, 96], sizes = [8, 32], strides = [1, 1]} : vector<8x128xf32> to vector<8x32xf32>
    %232 = arith.mulf %229, %216 : vector<8x32xf32>
    %233 = arith.mulf %228, %230 : vector<8x32xf32>
    %234 = arith.addf %232, %233 : vector<8x32xf32>
    %235 = math.tanh %234 : vector<8x32xf32>
    %236 = arith.mulf %231, %235 : vector<8x32xf32>
    %c0_107 = arith.constant 0 : index
    %c0_108 = arith.constant 0 : index
    %c0_109 = arith.constant 0 : index
    %237 = vector.load %arg13[%c0_107, %c0_108, %c0_109] : memref<2x8x32xf32, #tpu.memory_space<vmem>>, vector<1x8x32xf32>
    %238 = vector.shape_cast %237 : vector<1x8x32xf32> to vector<8x32xf32>
    %239 = vector.shape_cast %236 : vector<8x32xf32> to vector<1x8x32xf32>
    tpu.vector_store %arg13[%c0_107, %c0_108, %c0_109], %239 {strides = array<i32>} : memref<2x8x32xf32, #tpu.memory_space<vmem>>, vector<1x8x32xf32>,
    %c0_110 = arith.constant 0 : index
    %c0_111 = arith.constant 0 : index
    %c0_112 = arith.constant 0 : index
    %240 = vector.load %arg14[%c0_110, %c0_111, %c0_112] : memref<2x8x32xf32, #tpu.memory_space<vmem>>, vector<1x8x32xf32>
    %241 = vector.shape_cast %240 : vector<1x8x32xf32> to vector<8x32xf32>
    %242 = vector.shape_cast %234 : vector<8x32xf32> to vector<1x8x32xf32>
    tpu.vector_store %arg14[%c0_110, %c0_111, %c0_112], %242 {strides = array<i32>} : memref<2x8x32xf32, #tpu.memory_space<vmem>>, vector<1x8x32xf32>,
    %243 = tpu.concatenate %110, %128, %146, %164, %182, %200, %218, %236 in 0 : vector<8x32xf32>, vector<8x32xf32>, vector<8x32xf32>, vector<8x32xf32>, vector<8x32xf32>, vector<8x32xf32>, vector<8x32xf32>, vector<8x32xf32> -> vector<64x32xf32>
    %c0_113 = arith.constant 0 : index
    %c0_114 = arith.constant 0 : index
    %244 = vector.load %arg5[%c0_113, %c0_114] : memref<32x128xf32, #tpu.memory_space<vmem>>, vector<32x128xf32>
    %cst_115 = arith.constant dense<0.000000e+00> : vector<64x128xf32>
    %245 = tpu.matmul %243, %244, %cst_115 {dimension_numbers = #tpu.dot_dimension_numbers<[1], [0], [0], [1], [0, 0, 1, 1], [], []>} : vector<64x32xf32>, vector<32x128xf32>, vector<64x128xf32> -> vector<64x128xf32>
    %c0_116 = arith.constant 0 : index
    %c0_117 = arith.constant 0 : index
    %246 = vector.load %arg7[%c0_116, %c0_117] : memref<1x128xf32, #tpu.memory_space<vmem>>, vector<1x128xf32>
    %247 = vector.broadcast %246 : vector<1x128xf32> to vector<64x128xf32>
    %248 = arith.addf %245, %247 : vector<64x128xf32>
    %c0_118 = arith.constant 0 : index
    %c0_119 = arith.constant 0 : index
    %249 = vector.load %arg6[%c0_118, %c0_119] : memref<32x128xf32, #tpu.memory_space<vmem>>, vector<32x128xf32>
    %c1_120 = arith.constant 1 : index
    %c0_121 = arith.constant 0 : index
    %c0_122 = arith.constant 0 : index
    %250 = vector.load %arg8[%c1_120, %c0_121, %c0_122] : memref<2x8x32xf32, #tpu.memory_space<vmem>>, vector<1x8x32xf32>
    %251 = vector.shape_cast %250 : vector<1x8x32xf32> to vector<8x32xf32>
    %c1_123 = arith.constant 1 : index
    %c0_124 = arith.constant 0 : index
    %c0_125 = arith.constant 0 : index
    %252 = vector.load %arg9[%c1_123, %c0_124, %c0_125] : memref<2x8x32xf32, #tpu.memory_space<vmem>>, vector<1x8x32xf32>
    %253 = vector.shape_cast %252 : vector<1x8x32xf32> to vector<8x32xf32>
    %254 = vector.extract_strided_slice %248 {offsets = [0, 0], sizes = [8, 128], strides = [1, 1]} : vector<64x128xf32> to vector<8x128xf32>
    %cst_126 = arith.constant dense<0.000000e+00> : vector<8x128xf32>
    %255 = tpu.matmul %251, %249, %cst_126 {dimension_numbers = #tpu.dot_dimension_numbers<[1], [0], [0], [1], [0, 0, 1, 1], [], []>} : vector<8x32xf32>, vector<32x128xf32>, vector<8x128xf32> -> vector<8x128xf32>
    %256 = arith.addf %254, %255 : vector<8x128xf32>
    %257 = arith.negf %256 : vector<8x128xf32>
    %258 = math.exp %257 : vector<8x128xf32>
    %cst_127 = arith.constant 1.000000e+00 : f32
    %259 = vector.broadcast %cst_127 : f32 to vector<8x128xf32>
    %260 = arith.addf %259, %258 : vector<8x128xf32>
    %261 = arith.divf %259, %260 : vector<8x128xf32>
    %262 = math.tanh %256 : vector<8x128xf32>
    %263 = vector.extract_strided_slice %261 {offsets = [0, 0], sizes = [8, 32], strides = [1, 1]} : vector<8x128xf32> to vector<8x32xf32>
    %264 = vector.extract_strided_slice %261 {offsets = [0, 32], sizes = [8, 32], strides = [1, 1]} : vector<8x128xf32> to vector<8x32xf32>
    %265 = vector.extract_strided_slice %262 {offsets = [0, 64], sizes = [8, 32], strides = [1, 1]} : vector<8x128xf32> to vector<8x32xf32>
    %266 = vector.extract_strided_slice %261 {offsets = [0, 96], sizes = [8, 32], strides = [1, 1]} : vector<8x128xf32> to vector<8x32xf32>
    %267 = arith.mulf %264, %253 : vector<8x32xf32>
    %268 = arith.mulf %263, %265 : vector<8x32xf32>
    %269 = arith.addf %267, %268 : vector<8x32xf32>
    %270 = math.tanh %269 : vector<8x32xf32>
    %271 = arith.mulf %266, %270 : vector<8x32xf32>
    %272 = vector.extract_strided_slice %248 {offsets = [8, 0], sizes = [8, 128], strides = [1, 1]} : vector<64x128xf32> to vector<8x128xf32>
    %cst_128 = arith.constant dense<0.000000e+00> : vector<8x128xf32>
    %273 = tpu.matmul %271, %249, %cst_128 {dimension_numbers = #tpu.dot_dimension_numbers<[1], [0], [0], [1], [0, 0, 1, 1], [], []>} : vector<8x32xf32>, vector<32x128xf32>, vector<8x128xf32> -> vector<8x128xf32>
    %274 = arith.addf %272, %273 : vector<8x128xf32>
    %275 = arith.negf %274 : vector<8x128xf32>
    %276 = math.exp %275 : vector<8x128xf32>
    %cst_129 = arith.constant 1.000000e+00 : f32
    %277 = vector.broadcast %cst_129 : f32 to vector<8x128xf32>
    %278 = arith.addf %277, %276 : vector<8x128xf32>
    %279 = arith.divf %277, %278 : vector<8x128xf32>
    %280 = math.tanh %274 : vector<8x128xf32>
    %281 = vector.extract_strided_slice %279 {offsets = [0, 0], sizes = [8, 32], strides = [1, 1]} : vector<8x128xf32> to vector<8x32xf32>
    %282 = vector.extract_strided_slice %279 {offsets = [0, 32], sizes = [8, 32], strides = [1, 1]} : vector<8x128xf32> to vector<8x32xf32>
    %283 = vector.extract_strided_slice %280 {offsets = [0, 64], sizes = [8, 32], strides = [1, 1]} : vector<8x128xf32> to vector<8x32xf32>
    %284 = vector.extract_strided_slice %279 {offsets = [0, 96], sizes = [8, 32], strides = [1, 1]} : vector<8x128xf32> to vector<8x32xf32>
    %285 = arith.mulf %282, %269 : vector<8x32xf32>
    %286 = arith.mulf %281, %283 : vector<8x32xf32>
    %287 = arith.addf %285, %286 : vector<8x32xf32>
    %288 = math.tanh %287 : vector<8x32xf32>
    %289 = arith.mulf %284, %288 : vector<8x32xf32>
    %290 = vector.extract_strided_slice %248 {offsets = [16, 0], sizes = [8, 128], strides = [1, 1]} : vector<64x128xf32> to vector<8x128xf32>
    %cst_130 = arith.constant dense<0.000000e+00> : vector<8x128xf32>
    %291 = tpu.matmul %289, %249, %cst_130 {dimension_numbers = #tpu.dot_dimension_numbers<[1], [0], [0], [1], [0, 0, 1, 1], [], []>} : vector<8x32xf32>, vector<32x128xf32>, vector<8x128xf32> -> vector<8x128xf32>
    %292 = arith.addf %290, %291 : vector<8x128xf32>
    %293 = arith.negf %292 : vector<8x128xf32>
    %294 = math.exp %293 : vector<8x128xf32>
    %cst_131 = arith.constant 1.000000e+00 : f32
    %295 = vector.broadcast %cst_131 : f32 to vector<8x128xf32>
    %296 = arith.addf %295, %294 : vector<8x128xf32>
    %297 = arith.divf %295, %296 : vector<8x128xf32>
    %298 = math.tanh %292 : vector<8x128xf32>
    %299 = vector.extract_strided_slice %297 {offsets = [0, 0], sizes = [8, 32], strides = [1, 1]} : vector<8x128xf32> to vector<8x32xf32>
    %300 = vector.extract_strided_slice %297 {offsets = [0, 32], sizes = [8, 32], strides = [1, 1]} : vector<8x128xf32> to vector<8x32xf32>
    %301 = vector.extract_strided_slice %298 {offsets = [0, 64], sizes = [8, 32], strides = [1, 1]} : vector<8x128xf32> to vector<8x32xf32>
    %302 = vector.extract_strided_slice %297 {offsets = [0, 96], sizes = [8, 32], strides = [1, 1]} : vector<8x128xf32> to vector<8x32xf32>
    %303 = arith.mulf %300, %287 : vector<8x32xf32>
    %304 = arith.mulf %299, %301 : vector<8x32xf32>
    %305 = arith.addf %303, %304 : vector<8x32xf32>
    %306 = math.tanh %305 : vector<8x32xf32>
    %307 = arith.mulf %302, %306 : vector<8x32xf32>
    %308 = vector.extract_strided_slice %248 {offsets = [24, 0], sizes = [8, 128], strides = [1, 1]} : vector<64x128xf32> to vector<8x128xf32>
    %cst_132 = arith.constant dense<0.000000e+00> : vector<8x128xf32>
    %309 = tpu.matmul %307, %249, %cst_132 {dimension_numbers = #tpu.dot_dimension_numbers<[1], [0], [0], [1], [0, 0, 1, 1], [], []>} : vector<8x32xf32>, vector<32x128xf32>, vector<8x128xf32> -> vector<8x128xf32>
    %310 = arith.addf %308, %309 : vector<8x128xf32>
    %311 = arith.negf %310 : vector<8x128xf32>
    %312 = math.exp %311 : vector<8x128xf32>
    %cst_133 = arith.constant 1.000000e+00 : f32
    %313 = vector.broadcast %cst_133 : f32 to vector<8x128xf32>
    %314 = arith.addf %313, %312 : vector<8x128xf32>
    %315 = arith.divf %313, %314 : vector<8x128xf32>
    %316 = math.tanh %310 : vector<8x128xf32>
    %317 = vector.extract_strided_slice %315 {offsets = [0, 0], sizes = [8, 32], strides = [1, 1]} : vector<8x128xf32> to vector<8x32xf32>
    %318 = vector.extract_strided_slice %315 {offsets = [0, 32], sizes = [8, 32], strides = [1, 1]} : vector<8x128xf32> to vector<8x32xf32>
    %319 = vector.extract_strided_slice %316 {offsets = [0, 64], sizes = [8, 32], strides = [1, 1]} : vector<8x128xf32> to vector<8x32xf32>
    %320 = vector.extract_strided_slice %315 {offsets = [0, 96], sizes = [8, 32], strides = [1, 1]} : vector<8x128xf32> to vector<8x32xf32>
    %321 = arith.mulf %318, %305 : vector<8x32xf32>
    %322 = arith.mulf %317, %319 : vector<8x32xf32>
    %323 = arith.addf %321, %322 : vector<8x32xf32>
    %324 = math.tanh %323 : vector<8x32xf32>
    %325 = arith.mulf %320, %324 : vector<8x32xf32>
    %326 = vector.extract_strided_slice %248 {offsets = [32, 0], sizes = [8, 128], strides = [1, 1]} : vector<64x128xf32> to vector<8x128xf32>
    %cst_134 = arith.constant dense<0.000000e+00> : vector<8x128xf32>
    %327 = tpu.matmul %325, %249, %cst_134 {dimension_numbers = #tpu.dot_dimension_numbers<[1], [0], [0], [1], [0, 0, 1, 1], [], []>} : vector<8x32xf32>, vector<32x128xf32>, vector<8x128xf32> -> vector<8x128xf32>
    %328 = arith.addf %326, %327 : vector<8x128xf32>
    %329 = arith.negf %328 : vector<8x128xf32>
    %330 = math.exp %329 : vector<8x128xf32>
    %cst_135 = arith.constant 1.000000e+00 : f32
    %331 = vector.broadcast %cst_135 : f32 to vector<8x128xf32>
    %332 = arith.addf %331, %330 : vector<8x128xf32>
    %333 = arith.divf %331, %332 : vector<8x128xf32>
    %334 = math.tanh %328 : vector<8x128xf32>
    %335 = vector.extract_strided_slice %333 {offsets = [0, 0], sizes = [8, 32], strides = [1, 1]} : vector<8x128xf32> to vector<8x32xf32>
    %336 = vector.extract_strided_slice %333 {offsets = [0, 32], sizes = [8, 32], strides = [1, 1]} : vector<8x128xf32> to vector<8x32xf32>
    %337 = vector.extract_strided_slice %334 {offsets = [0, 64], sizes = [8, 32], strides = [1, 1]} : vector<8x128xf32> to vector<8x32xf32>
    %338 = vector.extract_strided_slice %333 {offsets = [0, 96], sizes = [8, 32], strides = [1, 1]} : vector<8x128xf32> to vector<8x32xf32>
    %339 = arith.mulf %336, %323 : vector<8x32xf32>
    %340 = arith.mulf %335, %337 : vector<8x32xf32>
    %341 = arith.addf %339, %340 : vector<8x32xf32>
    %342 = math.tanh %341 : vector<8x32xf32>
    %343 = arith.mulf %338, %342 : vector<8x32xf32>
    %344 = vector.extract_strided_slice %248 {offsets = [40, 0], sizes = [8, 128], strides = [1, 1]} : vector<64x128xf32> to vector<8x128xf32>
    %cst_136 = arith.constant dense<0.000000e+00> : vector<8x128xf32>
    %345 = tpu.matmul %343, %249, %cst_136 {dimension_numbers = #tpu.dot_dimension_numbers<[1], [0], [0], [1], [0, 0, 1, 1], [], []>} : vector<8x32xf32>, vector<32x128xf32>, vector<8x128xf32> -> vector<8x128xf32>
    %346 = arith.addf %344, %345 : vector<8x128xf32>
    %347 = arith.negf %346 : vector<8x128xf32>
    %348 = math.exp %347 : vector<8x128xf32>
    %cst_137 = arith.constant 1.000000e+00 : f32
    %349 = vector.broadcast %cst_137 : f32 to vector<8x128xf32>
    %350 = arith.addf %349, %348 : vector<8x128xf32>
    %351 = arith.divf %349, %350 : vector<8x128xf32>
    %352 = math.tanh %346 : vector<8x128xf32>
    %353 = vector.extract_strided_slice %351 {offsets = [0, 0], sizes = [8, 32], strides = [1, 1]} : vector<8x128xf32> to vector<8x32xf32>
    %354 = vector.extract_strided_slice %351 {offsets = [0, 32], sizes = [8, 32], strides = [1, 1]} : vector<8x128xf32> to vector<8x32xf32>
    %355 = vector.extract_strided_slice %352 {offsets = [0, 64], sizes = [8, 32], strides = [1, 1]} : vector<8x128xf32> to vector<8x32xf32>
    %356 = vector.extract_strided_slice %351 {offsets = [0, 96], sizes = [8, 32], strides = [1, 1]} : vector<8x128xf32> to vector<8x32xf32>
    %357 = arith.mulf %354, %341 : vector<8x32xf32>
    %358 = arith.mulf %353, %355 : vector<8x32xf32>
    %359 = arith.addf %357, %358 : vector<8x32xf32>
    %360 = math.tanh %359 : vector<8x32xf32>
    %361 = arith.mulf %356, %360 : vector<8x32xf32>
    %362 = vector.extract_strided_slice %248 {offsets = [48, 0], sizes = [8, 128], strides = [1, 1]} : vector<64x128xf32> to vector<8x128xf32>
    %cst_138 = arith.constant dense<0.000000e+00> : vector<8x128xf32>
    %363 = tpu.matmul %361, %249, %cst_138 {dimension_numbers = #tpu.dot_dimension_numbers<[1], [0], [0], [1], [0, 0, 1, 1], [], []>} : vector<8x32xf32>, vector<32x128xf32>, vector<8x128xf32> -> vector<8x128xf32>
    %364 = arith.addf %362, %363 : vector<8x128xf32>
    %365 = arith.negf %364 : vector<8x128xf32>
    %366 = math.exp %365 : vector<8x128xf32>
    %cst_139 = arith.constant 1.000000e+00 : f32
    %367 = vector.broadcast %cst_139 : f32 to vector<8x128xf32>
    %368 = arith.addf %367, %366 : vector<8x128xf32>
    %369 = arith.divf %367, %368 : vector<8x128xf32>
    %370 = math.tanh %364 : vector<8x128xf32>
    %371 = vector.extract_strided_slice %369 {offsets = [0, 0], sizes = [8, 32], strides = [1, 1]} : vector<8x128xf32> to vector<8x32xf32>
    %372 = vector.extract_strided_slice %369 {offsets = [0, 32], sizes = [8, 32], strides = [1, 1]} : vector<8x128xf32> to vector<8x32xf32>
    %373 = vector.extract_strided_slice %370 {offsets = [0, 64], sizes = [8, 32], strides = [1, 1]} : vector<8x128xf32> to vector<8x32xf32>
    %374 = vector.extract_strided_slice %369 {offsets = [0, 96], sizes = [8, 32], strides = [1, 1]} : vector<8x128xf32> to vector<8x32xf32>
    %375 = arith.mulf %372, %359 : vector<8x32xf32>
    %376 = arith.mulf %371, %373 : vector<8x32xf32>
    %377 = arith.addf %375, %376 : vector<8x32xf32>
    %378 = math.tanh %377 : vector<8x32xf32>
    %379 = arith.mulf %374, %378 : vector<8x32xf32>
    %380 = vector.extract_strided_slice %248 {offsets = [56, 0], sizes = [8, 128], strides = [1, 1]} : vector<64x128xf32> to vector<8x128xf32>
    %cst_140 = arith.constant dense<0.000000e+00> : vector<8x128xf32>
    %381 = tpu.matmul %379, %249, %cst_140 {dimension_numbers = #tpu.dot_dimension_numbers<[1], [0], [0], [1], [0, 0, 1, 1], [], []>} : vector<8x32xf32>, vector<32x128xf32>, vector<8x128xf32> -> vector<8x128xf32>
    %382 = arith.addf %380, %381 : vector<8x128xf32>
    %383 = arith.negf %382 : vector<8x128xf32>
    %384 = math.exp %383 : vector<8x128xf32>
    %cst_141 = arith.constant 1.000000e+00 : f32
    %385 = vector.broadcast %cst_141 : f32 to vector<8x128xf32>
    %386 = arith.addf %385, %384 : vector<8x128xf32>
    %387 = arith.divf %385, %386 : vector<8x128xf32>
    %388 = math.tanh %382 : vector<8x128xf32>
    %389 = vector.extract_strided_slice %387 {offsets = [0, 0], sizes = [8, 32], strides = [1, 1]} : vector<8x128xf32> to vector<8x32xf32>
    %390 = vector.extract_strided_slice %387 {offsets = [0, 32], sizes = [8, 32], strides = [1, 1]} : vector<8x128xf32> to vector<8x32xf32>
    %391 = vector.extract_strided_slice %388 {offsets = [0, 64], sizes = [8, 32], strides = [1, 1]} : vector<8x128xf32> to vector<8x32xf32>
    %392 = vector.extract_strided_slice %387 {offsets = [0, 96], sizes = [8, 32], strides = [1, 1]} : vector<8x128xf32> to vector<8x32xf32>
    %393 = arith.mulf %390, %377 : vector<8x32xf32>
    %394 = arith.mulf %389, %391 : vector<8x32xf32>
    %395 = arith.addf %393, %394 : vector<8x32xf32>
    %396 = math.tanh %395 : vector<8x32xf32>
    %397 = arith.mulf %392, %396 : vector<8x32xf32>
    %c1_142 = arith.constant 1 : index
    %c0_143 = arith.constant 0 : index
    %c0_144 = arith.constant 0 : index
    %398 = vector.load %arg13[%c1_142, %c0_143, %c0_144] : memref<2x8x32xf32, #tpu.memory_space<vmem>>, vector<1x8x32xf32>
    %399 = vector.shape_cast %398 : vector<1x8x32xf32> to vector<8x32xf32>
    %400 = vector.shape_cast %397 : vector<8x32xf32> to vector<1x8x32xf32>
    tpu.vector_store %arg13[%c1_142, %c0_143, %c0_144], %400 {strides = array<i32>} : memref<2x8x32xf32, #tpu.memory_space<vmem>>, vector<1x8x32xf32>,
    %c1_145 = arith.constant 1 : index
    %c0_146 = arith.constant 0 : index
    %c0_147 = arith.constant 0 : index
    %401 = vector.load %arg14[%c1_145, %c0_146, %c0_147] : memref<2x8x32xf32, #tpu.memory_space<vmem>>, vector<1x8x32xf32>
    %402 = vector.shape_cast %401 : vector<1x8x32xf32> to vector<8x32xf32>
    %403 = vector.shape_cast %395 : vector<8x32xf32> to vector<1x8x32xf32>
    tpu.vector_store %arg14[%c1_145, %c0_146, %c0_147], %403 {strides = array<i32>} : memref<2x8x32xf32, #tpu.memory_space<vmem>>, vector<1x8x32xf32>,
    %404 = tpu.concatenate %271, %289, %307, %325, %343, %361, %379, %397 in 0 : vector<8x32xf32>, vector<8x32xf32>, vector<8x32xf32>, vector<8x32xf32>, vector<8x32xf32>, vector<8x32xf32>, vector<8x32xf32>, vector<8x32xf32> -> vector<64x32xf32>
    %c0_148 = arith.constant 0 : index
    %c0_149 = arith.constant 0 : index
    %405 = vector.load %arg10[%c0_148, %c0_149] : memref<32x64xf32, #tpu.memory_space<vmem>>, vector<32x64xf32>
    %cst_150 = arith.constant dense<0.000000e+00> : vector<64x64xf32>
    %406 = tpu.matmul %404, %405, %cst_150 {dimension_numbers = #tpu.dot_dimension_numbers<[1], [0], [0], [1], [0, 0, 1, 1], [], []>} : vector<64x32xf32>, vector<32x64xf32>, vector<64x64xf32> -> vector<64x64xf32>
    %c0_151 = arith.constant 0 : index
    %c0_152 = arith.constant 0 : index
    %407 = vector.load %arg11[%c0_151, %c0_152] : memref<1x64xf32, #tpu.memory_space<vmem>>, vector<1x64xf32>
    %408 = vector.broadcast %407 : vector<1x64xf32> to vector<64x64xf32>
    %409 = arith.addf %406, %408 : vector<64x64xf32>
    %c0_153 = arith.constant 0 : index
    %c0_154 = arith.constant 0 : index
    %410 = vector.load %arg12[%c0_153, %c0_154] : memref<64x64xf32, #tpu.memory_space<vmem>>, vector<64x64xf32>
    tpu.vector_store %arg12[%c0_153, %c0_154], %409 {strides = array<i32>} : memref<64x64xf32, #tpu.memory_space<vmem>>, vector<64x64xf32>,
    return
  }
}

</mosaic_0001>

<llo_original>
// kernel: lstm_lm_forward.1
$region0: #{lstm_lm_forward.1}
  #allocation0 [shape = 'u32[]', space=smem, size = 0x4, offset = 0x4, fixed_abs, tag = 'smem constant byte address 0x4 - core index']
  #allocation1 [shape = 'u32[144,128]{1,0:T(1,128)}', space=vmem, size = 0x12000, scoped, tag = 'internal scratch']
  #allocation2 [shape = 'f32[64,32]{1,0:T(8,128)}', space=vmem, size = 0x8000, scoped, tag = 'scratch operand']
  %s0 = inlined_call_operand.hbm [shape: s32[2,8], index: 0, kind: input, shape index: {}]
  %s1 = inlined_call_operand.vmem [shape: f32[64,1,32], index: 1, kind: input, shape index: {}]
  %s2 = inlined_call_operand.vmem [shape: f32[32,128], index: 2, kind: input, shape index: {}]
  %s3 = inlined_call_operand.vmem [shape: f32[32,128], index: 3, kind: input, shape index: {}]
  %s4 = inlined_call_operand.vmem [shape: f32[1,128], index: 4, kind: input, shape index: {}]
  %s5 = inlined_call_operand.vmem [shape: f32[32,128], index: 5, kind: input, shape index: {}]
  %s6 = inlined_call_operand.vmem [shape: f32[32,128], index: 6, kind: input, shape index: {}]
  %s7 = inlined_call_operand.vmem [shape: f32[1,128], index: 7, kind: input, shape index: {}]
  %s8 = inlined_call_operand.vmem [shape: f32[2,8,32], index: 8, kind: input, shape index: {}, may-alias: {8,9}]
  %s9 = inlined_call_operand.vmem [shape: f32[2,8,32], index: 9, kind: input, shape index: {}, may-alias: {8,9}]
  %s10 = inlined_call_operand.hbm [shape: f32[32,64], index: 10, kind: input, shape index: {}]
  %s11 = inlined_call_operand.hbm [shape: f32[1,64], index: 11, kind: input, shape index: {}]
  %s12 = inlined_call_operand.vmem [shape: f32[64,64], index: 12, kind: output, shape index: {0}]
  %s13 = inlined_call_operand.vmem [shape: f32[2,8,32], index: 13, kind: output, shape index: {1}]
  %s14 = inlined_call_operand.vmem [shape: f32[2,8,32], index: 14, kind: output, shape index: {2}]
  %15 = xla_tuple %s12, %s13, %s14
  %s16 = sld [smem:[#allocation0]]
  $region86: #{lstm_lm_forward.1} parent=0
    _
  %s18 = ssub.s32 1, %s16
  %s19 = scalar_select 0, %s18, %s16
  $region1: #{lstm_lm_forward.1} parent=0
    #allocation3 [shape = 'u8[1024]{0}', space=smem, size = 0x400, scoped, tag = 'input window, operand 0, single buffered']
    #allocation4 [shape = 's32[1]{0}', space=sflag, size = 0x4, scoped, tag = 'scoped memory for lstm_lm_forward.1']
    #allocation5 [shape = 's32[1]{0}', space=sflag, size = 0x4, scoped, tag = 'scoped memory for lstm_lm_forward.1']
    #allocation6 [shape = 'u8[16384]{0}', space=vmem, size = 0x4000, scoped, tag = 'input window, operand 10, single buffered']
    #allocation7 [shape = 'u8[512]{0}', space=vmem, size = 0x400, scoped, tag = 'input window, operand 11, single buffered']
    #allocation8 [shape = 's32[1]{0}', space=sflag, size = 0x4, scoped, tag = 'scoped memory for lstm_lm_forward.1']
    %20 = vsyncpa [#allocation5], 0
    %21 = vsyncpa [#allocation4], 0
    %22 = vsyncpa [#allocation8], 0
    // Predicated region
    $region2: #{lstm_lm_forward.1} parent=1 // pred_check
      _
    $region3: #{lstm_lm_forward.1} parent=1 // pred_check_branch
      %24 = sbr.rel (0) target = $region5
    $region4: #{lstm_lm_forward.1} parent=1 // pred_region
      %s26 = ssub.s32 32, 32
      %27 = vsyncadd [#allocation5], %s26
      %30 = dma.hbm_to_smem %s0, 32, [#allocation3], [#allocation5]
    $region5: #{lstm_lm_forward.1} parent=1 // pred_fallthru
      _
    // Predicated region
    $region6: #{lstm_lm_forward.1} parent=1 // pred_check
      _
    $region7: #{lstm_lm_forward.1} parent=1 // pred_check_branch
      %32 = sbr.rel (0) target = $region9
    $region8: #{lstm_lm_forward.1} parent=1 // pred_region
      _
    $region9: #{lstm_lm_forward.1} parent=1 // pred_fallthru
      _
    // Predicated region
    $region10: #{lstm_lm_forward.1} parent=1 // pred_check
      _
    $region11: #{lstm_lm_forward.1} parent=1 // pred_check_branch
      %34 = sbr.rel (0) target = $region13
    $region12: #{lstm_lm_forward.1} parent=1 // pred_region
      _
    $region13: #{lstm_lm_forward.1} parent=1 // pred_fallthru
      _
    // Predicated region
    $region14: #{lstm_lm_forward.1} parent=1 // pred_check
      _
    $region15: #{lstm_lm_forward.1} parent=1 // pred_check_branch
      %36 = sbr.rel (0) target = $region17
    $region16: #{lstm_lm_forward.1} parent=1 // pred_region
      _
    $region17: #{lstm_lm_forward.1} parent=1 // pred_fallthru
      _
    // Predicated region
    $region18: #{lstm_lm_forward.1} parent=1 // pred_check
      _
    $region19: #{lstm_lm_forward.1} parent=1 // pred_check_branch
      %38 = sbr.rel (0) target = $region21
    $region20: #{lstm_lm_forward.1} parent=1 // pred_region
      _
    $region21: #{lstm_lm_forward.1} parent=1 // pred_fallthru
      _
    // Predicated region
    $region22: #{lstm_lm_forward.1} parent=1 // pred_check
      _
    $region23: #{lstm_lm_forward.1} parent=1 // pred_check_branch
      %40 = sbr.rel (0) target = $region25
    $region24: #{lstm_lm_forward.1} parent=1 // pred_region
      _
    $region25: #{lstm_lm_forward.1} parent=1 // pred_fallthru
      _
    // Predicated region
    $region26: #{lstm_lm_forward.1} parent=1 // pred_check
      _
    $region27: #{lstm_lm_forward.1} parent=1 // pred_check_branch
      %42 = sbr.rel (0) target = $region29
    $region28: #{lstm_lm_forward.1} parent=1 // pred_region
      _
    $region29: #{lstm_lm_forward.1} parent=1 // pred_fallthru
      _
    // Predicated region
    $region30: #{lstm_lm_forward.1} parent=1 // pred_check
      _
    $region31: #{lstm_lm_forward.1} parent=1 // pred_check_branch
      %44 = sbr.rel (0) target = $region33
    $region32: #{lstm_lm_forward.1} parent=1 // pred_region
      _
    $region33: #{lstm_lm_forward.1} parent=1 // pred_fallthru
      _
    // Predicated region
    $region34: #{lstm_lm_forward.1} parent=1 // pred_check
      _
    $region35: #{lstm_lm_forward.1} parent=1 // pred_check_branch
      %46 = sbr.rel (0) target = $region37
    $region36: #{lstm_lm_forward.1} parent=1 // pred_region
      _
    $region37: #{lstm_lm_forward.1} parent=1 // pred_fallthru
      _
    // Predicated region
    $region38: #{lstm_lm_forward.1} parent=1 // pred_check
      _
    $region39: #{lstm_lm_forward.1} parent=1 // pred_check_branch
      %48 = sbr.rel (0) target = $region41
    $region40: #{lstm_lm_forward.1} parent=1 // pred_region
      _
    $region41: #{lstm_lm_forward.1} parent=1 // pred_fallthru
      _
    // Predicated region
    $region42: #{lstm_lm_forward.1} parent=1 // pred_check
      _
    $region43: #{lstm_lm_forward.1} parent=1 // pred_check_branch
      %50 = sbr.rel (0) target = $region45
    $region44: #{lstm_lm_forward.1} parent=1 // pred_region
      %s52 = ssub.s32 512, 512
      %53 = vsyncadd [#allocation4], %s52
      %s54 = sshll.u32 [#allocation6], 4
      %s55 = int_to_ptr.vmem [resolvable:$true] %s54
      %60 = dma.hbm_to_vmem [thread:$0]  %s10, 512, %s55, [#allocation4], 128, 128, 8
    $region45: #{lstm_lm_forward.1} parent=1 // pred_fallthru
      _
    // Predicated region
    $region46: #{lstm_lm_forward.1} parent=1 // pred_check
      _
    $region47: #{lstm_lm_forward.1} parent=1 // pred_check_branch
      %62 = sbr.rel (0) target = $region49
    $region48: #{lstm_lm_forward.1} parent=1 // pred_region
      %s64 = ssub.s32 16, 16
      %65 = vsyncadd [#allocation8], %s64
      %s67 = sshll.u32 [#allocation7], 4
      %s68 = int_to_ptr.vmem [resolvable:$true] %s67
      %70 = dma.hbm_to_vmem [thread:$0]  %s11, 16, %s68, [#allocation8]
    $region49: #{lstm_lm_forward.1} parent=1 // pred_fallthru
      _
    // Predicated region
    $region50: #{lstm_lm_forward.1} parent=1 // pred_check
      _
    $region51: #{lstm_lm_forward.1} parent=1 // pred_check_branch
      %72 = sbr.rel (0) target = $region53
    $region52: #{lstm_lm_forward.1} parent=1 // pred_region
      %73 = dma.done [#allocation5], 32
    $region53: #{lstm_lm_forward.1} parent=1 // pred_fallthru
      _
    // Predicated region
    $region54: #{lstm_lm_forward.1} parent=1 // pred_check
      _
    $region55: #{lstm_lm_forward.1} parent=1 // pred_check_branch
      %75 = sbr.rel (0) target = $region57
    $region56: #{lstm_lm_forward.1} parent=1 // pred_region
      %76 = dma.done [#allocation4], 512
    $region57: #{lstm_lm_forward.1} parent=1 // pred_fallthru
      _
    // Predicated region
    $region58: #{lstm_lm_forward.1} parent=1 // pred_check
      _
    $region59: #{lstm_lm_forward.1} parent=1 // pred_check_branch
      %78 = sbr.rel (0) target = $region61
    $region60: #{lstm_lm_forward.1} parent=1 // pred_region
      %79 = dma.done [#allocation8], 16
    $region61: #{lstm_lm_forward.1} parent=1 // pred_fallthru
      _
    %80 = sfence
    %vm81 = vcmask 261120
    %82 = vst.msk [vmem:[#allocation2] sm:$0xff] %vm81, 0.0
    %83 = vst.msk [vmem:[#allocation2 + $0x8] sm:$0xff] %vm81, 0.0
    %84 = vst.msk [vmem:[#allocation2 + $0x10] sm:$0xff] %vm81, 0.0
    %85 = vst.msk [vmem:[#allocation2 + $0x18] sm:$0xff] %vm81, 0.0
    %86 = vst.msk [vmem:[#allocation2 + $0x20] sm:$0xff] %vm81, 0.0
    %87 = vst.msk [vmem:[#allocation2 + $0x28] sm:$0xff] %vm81, 0.0
    %88 = vst.msk [vmem:[#allocation2 + $0x30] sm:$0xff] %vm81, 0.0
    %89 = vst.msk [vmem:[#allocation2 + $0x38] sm:$0xff] %vm81, 0.0
    %s90 = sld [smem:[#allocation3]]
    %s91 = scalar_lea.vmem %s1, %s90
    %v92 = vld [vmem:[%s91] sm:$0x1]
    %vm93 = vcmask 253952
    %94 = vst.msk [vmem:[#allocation2] sm:$0x1] %vm93, %v92
    %s95 = sld [smem:[#allocation3 + $0x80]]
    %s96 = scalar_lea.vmem %s1, %s95
    %v97 = vld [vmem:[%s96] sm:$0x1]
    %98 = vst.msk [vmem:[#allocation2 + $0x1] sm:$0x1] %vm93, %v97
    %s99 = sld [smem:[#allocation3 + $0x1]]
    %s100 = scalar_lea.vmem %s1, %s99
    %v101 = vld [vmem:[%s100] sm:$0x1]
    %102 = vst.msk [vmem:[#allocation2 + $0x8] sm:$0x1] %vm93, %v101
    %s103 = sld [smem:[#allocation3 + $0x81]]
    %s104 = scalar_lea.vmem %s1, %s103
    %v105 = vld [vmem:[%s104] sm:$0x1]
    %106 = vst.msk [vmem:[#allocation2 + $0x9] sm:$0x1] %vm93, %v105
    %s107 = sld [smem:[#allocation3 + $0x2]]
    %s108 = scalar_lea.vmem %s1, %s107
    %v109 = vld [vmem:[%s108] sm:$0x1]
    %110 = vst.msk [vmem:[#allocation2 + $0x10] sm:$0x1] %vm93, %v109
    %s111 = sld [smem:[#allocation3 + $0x82]]
    %s112 = scalar_lea.vmem %s1, %s111
    %v113 = vld [vmem:[%s112] sm:$0x1]
    %114 = vst.msk [vmem:[#allocation2 + $0x11] sm:$0x1] %vm93, %v113
    %s115 = sld [smem:[#allocation3 + $0x3]]
    %s116 = scalar_lea.vmem %s1, %s115
    %v117 = vld [vmem:[%s116] sm:$0x1]
    %118 = vst.msk [vmem:[#allocation2 + $0x18] sm:$0x1] %vm93, %v117
    %s119 = sld [smem:[#allocation3 + $0x83]]
    %s120 = scalar_lea.vmem %s1, %s119
    %v121 = vld [vmem:[%s120] sm:$0x1]
    %122 = vst.msk [vmem:[#allocation2 + $0x19] sm:$0x1] %vm93, %v121
    %s123 = sld [smem:[#allocation3 + $0x4]]
    %s124 = scalar_lea.vmem %s1, %s123
    %v125 = vld [vmem:[%s124] sm:$0x1]
    %126 = vst.msk [vmem:[#allocation2 + $0x20] sm:$0x1] %vm93, %v125
    %s127 = sld [smem:[#allocation3 + $0x84]]
    %s128 = scalar_lea.vmem %s1, %s127
    %v129 = vld [vmem:[%s128] sm:$0x1]
    %130 = vst.msk [vmem:[#allocation2 + $0x21] sm:$0x1] %vm93, %v129
    %s131 = sld [smem:[#allocation3 + $0x5]]
    %s132 = scalar_lea.vmem %s1, %s131
    %v133 = vld [vmem:[%s132] sm:$0x1]
    %134 = vst.msk [vmem:[#allocation2 + $0x28] sm:$0x1] %vm93, %v133
    %s135 = sld [smem:[#allocation3 + $0x85]]
    %s136 = scalar_lea.vmem %s1, %s135
    %v137 = vld [vmem:[%s136] sm:$0x1]
    %138 = vst.msk [vmem:[#allocation2 + $0x29] sm:$0x1] %vm93, %v137
    %s139 = sld [smem:[#allocation3 + $0x6]]
    %s140 = scalar_lea.vmem %s1, %s139
    %v141 = vld [vmem:[%s140] sm:$0x1]
    %142 = vst.msk [vmem:[#allocation2 + $0x30] sm:$0x1] %vm93, %v141
    %s143 = sld [smem:[#allocation3 + $0x86]]
    %s144 = scalar_lea.vmem %s1, %s143
    %v145 = vld [vmem:[%s144] sm:$0x1]
    %146 = vst.msk [vmem:[#allocation2 + $0x31] sm:$0x1] %vm93, %v145
    %s147 = sld [smem:[#allocation3 + $0x7]]
    %s148 = scalar_lea.vmem %s1, %s147
    %v149 = vld [vmem:[%s148] sm:$0x1]
    %150 = vst.msk [vmem:[#allocation2 + $0x38] sm:$0x1] %vm93, %v149
    %s151 = sld [smem:[#allocation3 + $0x87]]
    %s152 = scalar_lea.vmem %s1, %s151
    %v153 = vld [vmem:[%s152] sm:$0x1]
    %154 = vst.msk [vmem:[#allocation2 + $0x39] sm:$0x1] %vm93, %v153
    %v155 = vld [vmem:[#allocation2] sm:$0xff]
    %v156 = vld [vmem:[#allocation2 + $0x8] sm:$0xff]
    %v157 = vld [vmem:[#allocation2 + $0x10] sm:$0xff]
    %v158 = vld [vmem:[#allocation2 + $0x18] sm:$0xff]
    %v159 = vld [vmem:[#allocation2 + $0x20] sm:$0xff]
    %v160 = vld [vmem:[#allocation2 + $0x28] sm:$0xff]
    %v161 = vld [vmem:[#allocation2 + $0x30] sm:$0xff]
    %v162 = vld [vmem:[#allocation2 + $0x38] sm:$0xff]
    %v163 = vld [vmem:[%s2] sm:$0xff]
    %v164 = vld [vmem:[%s2 + $0x8] sm:$0xff]
    %v165 = vld [vmem:[%s2 + $0x10] sm:$0xff]
    %v166 = vld [vmem:[%s2 + $0x18] sm:$0xff]
    %v167 = vld [vmem:[%s4] sm:$0x1]
    %v169 = vlaneseq
    %v170 = vshrl.u32 %v169, 7
    %v171 = vsub.s32 0, %v170
    %v172 = vrot.slane %v167, %v171
    %v175 = vsel %vm81, %v155, 0
    %v178 = vsel %vm81, %v156, 0
    %v181 = vsel %vm81, %v157, 0
    %v184 = vsel %vm81, %v158, 0
    %v187 = vsel %vm81, %v159, 0
    %v190 = vsel %vm81, %v160, 0
    %v193 = vsel %vm81, %v161, 0
    %v196 = vsel %vm81, %v162, 0
    %198 = vmatprep.subr.mxu0 0.0
    %199 = vmatpush1.msra.mxu0 0.0
    %200 = vmatprep.subr.mxu0 0.0
    %201 = vmatpush1.msra.mxu0 0.0
    %202 = vmatprep.subr.mxu0 0.0
    %203 = vmatpush1.msra.mxu0 0.0
    %204 = vmatprep.subr.mxu0 0.0
    %205 = vmatpush1.msra.mxu0 0.0
    %206 = vmatprep.subr.mxu0 0.0
    %207 = vmatpush1.msra.mxu0 0.0
    %208 = vmatprep.subr.mxu0 0.0
    %209 = vmatpush1.msra.mxu0 0.0
    %210 = vmatprep.subr.mxu0 0.0
    %211 = vmatpush1.msra.mxu0 0.0
    %212 = vmatprep.subr.mxu0 0.0
    %213 = vmatpush1.msra.mxu0 0.0
    %214 = vmatprep.subr.mxu0 0.0
    %215 = vmatpush1.msra.mxu0 0.0
    %216 = vmatprep.subr.mxu0 0.0
    %217 = vmatpush1.msra.mxu0 0.0
    %218 = vmatprep.subr.mxu0 0.0
    %219 = vmatpush1.msra.mxu0 0.0
    %220 = vmatprep.subr.mxu0 0.0
    %221 = vmatpush1.msra.mxu0 0.0
    %222 = vmatprep.subr.mxu0 0.0
    %223 = vmatpush1.msra.mxu0 %v166
    %224 = vmatprep.subr.mxu0 0.0
    %225 = vmatpush1.msra.mxu0 %v165
    %226 = vmatprep.subr.mxu0 0.0
    %227 = vmatpush1.msra.mxu0 %v164
    %228 = vmatprep.subr.mxu0 0.0
    %229 = vmatpush1.msra.mxu0 %v163
    %230 = vmatprep.subr.mxu0 0.0
    %231 = vmatpush2.msra.mxu0 0.0
    %232 = vmatprep.subr.mxu0 0.0
    %233 = vmatpush2.msra.mxu0 0.0
    %234 = vmatprep.subr.mxu0 0.0
    %235 = vmatpush2.msra.mxu0 0.0
    %236 = vmatprep.subr.mxu0 0.0
    %237 = vmatpush2.msra.mxu0 0.0
    %238 = vmatprep.subr.mxu0 0.0
    %239 = vmatpush2.msra.mxu0 0.0
    %240 = vmatprep.subr.mxu0 0.0
    %241 = vmatpush2.msra.mxu0 0.0
    %242 = vmatprep.subr.mxu0 0.0
    %243 = vmatpush2.msra.mxu0 0.0
    %244 = vmatprep.subr.mxu0 0.0
    %245 = vmatpush2.msra.mxu0 0.0
    %246 = vmatprep.subr.mxu0 0.0
    %247 = vmatpush2.msra.mxu0 0.0
    %248 = vmatprep.subr.mxu0 0.0
    %249 = vmatpush2.msra.mxu0 0.0
    %250 = vmatprep.subr.mxu0 0.0
    %251 = vmatpush2.msra.mxu0 0.0
    %252 = vmatprep.subr.mxu0 0.0
    %253 = vmatpush2.msra.mxu0 0.0
    %254 = vmatprep.subr.mxu0 0.0
    %255 = vmatpush2.msra.mxu0 0.0
    %256 = vmatprep.subr.mxu0 0.0
    %257 = vmatpush2.msra.mxu0 0.0
    %258 = vmatprep.subr.mxu0 0.0
    %259 = vmatpush2.msra.mxu0 0.0
    %260 = vmatprep.subr.mxu0 0.0
    %261 = vmatpush2.msra.mxu0 0.0
    %262 = vmatprep.mubr.f32.mxu0 0.0
    %263 = vmatmul.mubr.f32.gmra.mxu0 %v175
    %v264 = vpop.f32.mrf.mxu0
    %v265 = vadd.f32 %v172, %v264
    %v266 = vpop.f32.mrf.mxu0
    %267 = vmatprep.mubr.f32.mxu0 0.0
    %268 = vmatmul.mubr.f32.gmra.mxu0 %v178
    %v269 = vpop.f32.mrf.mxu0
    %v270 = vadd.f32 %v172, %v269
    %v271 = vpop.f32.mrf.mxu0
    %272 = vmatprep.mubr.f32.mxu0 0.0
    %273 = vmatmul.mubr.f32.gmra.mxu0 %v181
    %v274 = vpop.f32.mrf.mxu0
    %v275 = vadd.f32 %v172, %v274
    %v276 = vpop.f32.mrf.mxu0
    %277 = vmatprep.mubr.f32.mxu0 0.0
    %278 = vmatmul.mubr.f32.gmra.mxu0 %v184
    %v279 = vpop.f32.mrf.mxu0
    %v280 = vadd.f32 %v172, %v279
    %v281 = vpop.f32.mrf.mxu0
    %282 = vmatprep.mubr.f32.mxu0 0.0
    %283 = vmatmul.mubr.f32.gmra.mxu0 %v187
    %v284 = vpop.f32.mrf.mxu0
    %v285 = vadd.f32 %v172, %v284
    %v286 = vpop.f32.mrf.mxu0
    %287 = vmatprep.mubr.f32.mxu0 0.0
    %288 = vmatmul.mubr.f32.gmra.mxu0 %v190
    %v289 = vpop.f32.mrf.mxu0
    %v290 = vadd.f32 %v172, %v289
    %v291 = vpop.f32.mrf.mxu0
    %292 = vmatprep.mubr.f32.mxu0 0.0
    %293 = vmatmul.mubr.f32.gmra.mxu0 %v193
    %v294 = vpop.f32.mrf.mxu0
    %v295 = vadd.f32 %v172, %v294
    %v296 = vpop.f32.mrf.mxu0
    %297 = vmatprep.mubr.f32.mxu0 0.0
    %298 = vmatmul.mubr.f32.gmra.mxu0 %v196
    %v299 = vpop.f32.mrf.mxu0
    %v300 = vadd.f32 %v172, %v299
    %v301 = vpop.f32.mrf.mxu0
    %302 = vdwg.mxu0
    %v303 = vld [vmem:[%s3] sm:$0xff]
    %v304 = vld [vmem:[%s3 + $0x8] sm:$0xff]
    %v305 = vld [vmem:[%s3 + $0x10] sm:$0xff]
    %v306 = vld [vmem:[%s3 + $0x18] sm:$0xff]
    %v307 = vld [vmem:[%s8] sm:$0xff]
    %v308 = vld [vmem:[%s9] sm:$0xff]
    %v310 = vsel %vm81, %v307, 0
    %312 = vmatprep.subr.mxu0 0.0
    %313 = vmatpush1.msra.mxu0 0.0
    %314 = vmatprep.subr.mxu0 0.0
    %315 = vmatpush1.msra.mxu0 0.0
    %316 = vmatprep.subr.mxu0 0.0
    %317 = vmatpush1.msra.mxu0 0.0
    %318 = vmatprep.subr.mxu0 0.0
    %319 = vmatpush1.msra.mxu0 0.0
    %320 = vmatprep.subr.mxu0 0.0
    %321 = vmatpush1.msra.mxu0 0.0
    %322 = vmatprep.subr.mxu0 0.0
    %323 = vmatpush1.msra.mxu0 0.0
    %324 = vmatprep.subr.mxu0 0.0
    %325 = vmatpush1.msra.mxu0 0.0
    %326 = vmatprep.subr.mxu0 0.0
    %327 = vmatpush1.msra.mxu0 0.0
    %328 = vmatprep.subr.mxu0 0.0
    %329 = vmatpush1.msra.mxu0 0.0
    %330 = vmatprep.subr.mxu0 0.0
    %331 = vmatpush1.msra.mxu0 0.0
    %332 = vmatprep.subr.mxu0 0.0
    %333 = vmatpush1.msra.mxu0 0.0
    %334 = vmatprep.subr.mxu0 0.0
    %335 = vmatpush1.msra.mxu0 0.0
    %336 = vmatprep.subr.mxu0 0.0
    %337 = vmatpush1.msra.mxu0 %v306
    %338 = vmatprep.subr.mxu0 0.0
    %339 = vmatpush1.msra.mxu0 %v305
    %340 = vmatprep.subr.mxu0 0.0
    %341 = vmatpush1.msra.mxu0 %v304
    %342 = vmatprep.subr.mxu0 0.0
    %343 = vmatpush1.msra.mxu0 %v303
    %344 = vmatprep.subr.mxu0 0.0
    %345 = vmatpush2.msra.mxu0 0.0
    %346 = vmatprep.subr.mxu0 0.0
    %347 = vmatpush2.msra.mxu0 0.0
    %348 = vmatprep.subr.mxu0 0.0
    %349 = vmatpush2.msra.mxu0 0.0
    %350 = vmatprep.subr.mxu0 0.0
    %351 = vmatpush2.msra.mxu0 0.0
    %352 = vmatprep.subr.mxu0 0.0
    %353 = vmatpush2.msra.mxu0 0.0
    %354 = vmatprep.subr.mxu0 0.0
    %355 = vmatpush2.msra.mxu0 0.0
    %356 = vmatprep.subr.mxu0 0.0
    %357 = vmatpush2.msra.mxu0 0.0
    %358 = vmatprep.subr.mxu0 0.0
    %359 = vmatpush2.msra.mxu0 0.0
    %360 = vmatprep.subr.mxu0 0.0
    %361 = vmatpush2.msra.mxu0 0.0
    %362 = vmatprep.subr.mxu0 0.0
    %363 = vmatpush2.msra.mxu0 0.0
    %364 = vmatprep.subr.mxu0 0.0
    %365 = vmatpush2.msra.mxu0 0.0
    %366 = vmatprep.subr.mxu0 0.0
    %367 = vmatpush2.msra.mxu0 0.0
    %368 = vmatprep.subr.mxu0 0.0
    %369 = vmatpush2.msra.mxu0 0.0
    %370 = vmatprep.subr.mxu0 0.0
    %371 = vmatpush2.msra.mxu0 0.0
    %372 = vmatprep.subr.mxu0 0.0
    %373 = vmatpush2.msra.mxu0 0.0
    %374 = vmatprep.subr.mxu0 0.0
    %375 = vmatpush2.msra.mxu0 0.0
    %376 = vmatprep.mubr.f32.mxu0 0.0
    %377 = vmatmul.mubr.f32.gmra.mxu0 %v310
    %v378 = vpop.f32.mrf.mxu0
    %v379 = vadd.f32 0.0, %v378
    %v380 = vpop.f32.mrf.mxu0
    %381 = vdwg.mxu0
    %v382 = vadd.f32 %v265, %v379
    %v383 = vxor.u32 %v382, 2147483648
    %v384 = vmul.f32 %v383, 1.442695
    %v385 = vpow.pop %v384
    %v386 = vadd.f32 %v385, 1.0
    %v387 = vrcp.pop %v386
    %v388 = vmul.f32 1.0, %v387
    %v389 = vtanh.pop %v382
    %391 = vrot.lane.b32.xlu0 %v308, 32
    %v392 = vpop.permute.xlu0 %391
    %v394 = vmul.f32 %v388, %v392
    %396 = vrot.lane.b32.xlu0 %v389, 64
    %v397 = vpop.permute.xlu0 %396
    %v399 = vmul.f32 %v388, %v397
    %401 = vrot.lane.b32.xlu0 %v399, 32
    %v402 = vpop.permute.xlu0 %401
    %v404 = vadd.f32 %v394, %v402
    %v405 = vtanh.pop %v404
    %407 = vrot.lane.b32.xlu0 %v405, 64
    %v408 = vpop.permute.xlu0 %407
    %v410 = vmul.f32 %v388, %v408
    %412 = vrot.lane.b32.xlu0 %v410, 32
    %v413 = vpop.permute.xlu0 %412
    %v414 = vsel %vm81, %v413, 0
    %416 = vmatprep.subr.mxu0 0.0
    %417 = vmatpush1.msra.mxu0 0.0
    %418 = vmatprep.subr.mxu0 0.0
    %419 = vmatpush1.msra.mxu0 0.0
    %420 = vmatprep.subr.mxu0 0.0
    %421 = vmatpush1.msra.mxu0 0.0
    %422 = vmatprep.subr.mxu0 0.0
    %423 = vmatpush1.msra.mxu0 0.0
    %424 = vmatprep.subr.mxu0 0.0
    %425 = vmatpush1.msra.mxu0 0.0
    %426 = vmatprep.subr.mxu0 0.0
    %427 = vmatpush1.msra.mxu0 0.0
    %428 = vmatprep.subr.mxu0 0.0
    %429 = vmatpush1.msra.mxu0 0.0
    %430 = vmatprep.subr.mxu0 0.0
    %431 = vmatpush1.msra.mxu0 0.0
    %432 = vmatprep.subr.mxu0 0.0
    %433 = vmatpush1.msra.mxu0 0.0
    %434 = vmatprep.subr.mxu0 0.0
    %435 = vmatpush1.msra.mxu0 0.0
    %436 = vmatprep.subr.mxu0 0.0
    %437 = vmatpush1.msra.mxu0 0.0
    %438 = vmatprep.subr.mxu0 0.0
    %439 = vmatpush1.msra.mxu0 0.0
    %440 = vmatprep.subr.mxu0 0.0
    %441 = vmatpush1.msra.mxu0 %v306
    %442 = vmatprep.subr.mxu0 0.0
    %443 = vmatpush1.msra.mxu0 %v305
    %444 = vmatprep.subr.mxu0 0.0
    %445 = vmatpush1.msra.mxu0 %v304
    %446 = vmatprep.subr.mxu0 0.0
    %447 = vmatpush1.msra.mxu0 %v303
    %448 = vmatprep.subr.mxu0 0.0
    %449 = vmatpush2.msra.mxu0 0.0
    %450 = vmatprep.subr.mxu0 0.0
    %451 = vmatpush2.msra.mxu0 0.0
    %452 = vmatprep.subr.mxu0 0.0
    %453 = vmatpush2.msra.mxu0 0.0
    %454 = vmatprep.subr.mxu0 0.0
    %455 = vmatpush2.msra.mxu0 0.0
    %456 = vmatprep.subr.mxu0 0.0
    %457 = vmatpush2.msra.mxu0 0.0
    %458 = vmatprep.subr.mxu0 0.0
    %459 = vmatpush2.msra.mxu0 0.0
    %460 = vmatprep.subr.mxu0 0.0
    %461 = vmatpush2.msra.mxu0 0.0
    %462 = vmatprep.subr.mxu0 0.0
    %463 = vmatpush2.msra.mxu0 0.0
    %464 = vmatprep.subr.mxu0 0.0
    %465 = vmatpush2.msra.mxu0 0.0
    %466 = vmatprep.subr.mxu0 0.0
    %467 = vmatpush2.msra.mxu0 0.0
    %468 = vmatprep.subr.mxu0 0.0
    %469 = vmatpush2.msra.mxu0 0.0
    %470 = vmatprep.subr.mxu0 0.0
    %471 = vmatpush2.msra.mxu0 0.0
    %472 = vmatprep.subr.mxu0 0.0
    %473 = vmatpush2.msra.mxu0 0.0
    %474 = vmatprep.subr.mxu0 0.0
    %475 = vmatpush2.msra.mxu0 0.0
    %476 = vmatprep.subr.mxu0 0.0
    %477 = vmatpush2.msra.mxu0 0.0
    %478 = vmatprep.subr.mxu0 0.0
    %479 = vmatpush2.msra.mxu0 0.0
    %480 = vmatprep.mubr.f32.mxu0 0.0
    %481 = vmatmul.mubr.f32.gmra.mxu0 %v414
    %v482 = vpop.f32.mrf.mxu0
    %v483 = vadd.f32 0.0, %v482
    %v484 = vpop.f32.mrf.mxu0
    %485 = vdwg.mxu0
    %v486 = vadd.f32 %v270, %v483
    %v487 = vxor.u32 %v486, 2147483648
    %v488 = vmul.f32 %v487, 1.442695
    %v489 = vpow.pop %v488
    %v490 = vadd.f32 %v489, 1.0
    %v491 = vrcp.pop %v490
    %v492 = vmul.f32 1.0, %v491
    %v493 = vtanh.pop %v486
    %v494 = vmul.f32 %v492, %v404
    %496 = vrot.lane.b32.xlu0 %v493, 64
    %v497 = vpop.permute.xlu0 %496
    %v499 = vmul.f32 %v492, %v497
    %501 = vrot.lane.b32.xlu0 %v499, 32
    %v502 = vpop.permute.xlu0 %501
    %v504 = vadd.f32 %v494, %v502
    %v505 = vtanh.pop %v504
    %507 = vrot.lane.b32.xlu0 %v505, 64
    %v508 = vpop.permute.xlu0 %507
    %v510 = vmul.f32 %v492, %v508
    %512 = vrot.lane.b32.xlu0 %v510, 32
    %v513 = vpop.permute.xlu0 %512
    %v514 = vsel %vm81, %v513, 0
    %516 = vmatprep.subr.mxu0 0.0
    %517 = vmatpush1.msra.mxu0 0.0
    %518 = vmatprep.subr.mxu0 0.0
    %519 = vmatpush1.msra.mxu0 0.0
    %520 = vmatprep.subr.mxu0 0.0
    %521 = vmatpush1.msra.mxu0 0.0
    %522 = vmatprep.subr.mxu0 0.0
    %523 = vmatpush1.msra.mxu0 0.0
    %524 = vmatprep.subr.mxu0 0.0
    %525 = vmatpush1.msra.mxu0 0.0
    %526 = vmatprep.subr.mxu0 0.0
    %527 = vmatpush1.msra.mxu0 0.0
    %528 = vmatprep.subr.mxu0 0.0
    %529 = vmatpush1.msra.mxu0 0.0
    %530 = vmatprep.subr.mxu0 0.0
    %531 = vmatpush1.msra.mxu0 0.0
    %532 = vmatprep.subr.mxu0 0.0
    %533 = vmatpush1.msra.mxu0 0.0
    %534 = vmatprep.subr.mxu0 0.0
    %535 = vmatpush1.msra.mxu0 0.0
    %536 = vmatprep.subr.mxu0 0.0
    %537 = vmatpush1.msra.mxu0 0.0
    %538 = vmatprep.subr.mxu0 0.0
    %539 = vmatpush1.msra.mxu0 0.0
    %540 = vmatprep.subr.mxu0 0.0
    %541 = vmatpush1.msra.mxu0 %v306
    %542 = vmatprep.subr.mxu0 0.0
    %543 = vmatpush1.msra.mxu0 %v305
    %544 = vmatprep.subr.mxu0 0.0
    %545 = vmatpush1.msra.mxu0 %v304
    %546 = vmatprep.subr.mxu0 0.0
    %547 = vmatpush1.msra.mxu0 %v303
    %548 = vmatprep.subr.mxu0 0.0
    %549 = vmatpush2.msra.mxu0 0.0
    %550 = vmatprep.subr.mxu0 0.0
    %551 = vmatpush2.msra.mxu0 0.0
    %552 = vmatprep.subr.mxu0 0.0
    %553 = vmatpush2.msra.mxu0 0.0
    %554 = vmatprep.subr.mxu0 0.0
    %555 = vmatpush2.msra.mxu0 0.0
    %556 = vmatprep.subr.mxu0 0.0
    %557 = vmatpush2.msra.mxu0 0.0
    %558 = vmatprep.subr.mxu0 0.0
    %559 = vmatpush2.msra.mxu0 0.0
    %560 = vmatprep.subr.mxu0 0.0
    %561 = vmatpush2.msra.mxu0 0.0
    %562 = vmatprep.subr.mxu0 0.0
    %563 = vmatpush2.msra.mxu0 0.0
    %564 = vmatprep.subr.mxu0 0.0
    %565 = vmatpush2.msra.mxu0 0.0
    %566 = vmatprep.subr.mxu0 0.0
    %567 = vmatpush2.msra.mxu0 0.0
    %568 = vmatprep.subr.mxu0 0.0
    %569 = vmatpush2.msra.mxu0 0.0
    %570 = vmatprep.subr.mxu0 0.0
    %571 = vmatpush2.msra.mxu0 0.0
    %572 = vmatprep.subr.mxu0 0.0
    %573 = vmatpush2.msra.mxu0 0.0
    %574 = vmatprep.subr.mxu0 0.0
    %575 = vmatpush2.msra.mxu0 0.0
    %576 = vmatprep.subr.mxu0 0.0
    %577 = vmatpush2.msra.mxu0 0.0
    %578 = vmatprep.subr.mxu0 0.0
    %579 = vmatpush2.msra.mxu0 0.0
    %580 = vmatprep.mubr.f32.mxu0 0.0
    %581 = vmatmul.mubr.f32.gmra.mxu0 %v514
    %v582 = vpop.f32.mrf.mxu0
    %v583 = vadd.f32 0.0, %v582
    %v584 = vpop.f32.mrf.mxu0
    %585 = vdwg.mxu0
    %v586 = vadd.f32 %v275, %v583
    %v587 = vxor.u32 %v586, 2147483648
    %v588 = vmul.f32 %v587, 1.442695
    %v589 = vpow.pop %v588
    %v590 = vadd.f32 %v589, 1.0
    %v591 = vrcp.pop %v590
    %v592 = vmul.f32 1.0, %v591
    %v593 = vtanh.pop %v586
    %v594 = vmul.f32 %v592, %v504
    %596 = vrot.lane.b32.xlu0 %v593, 64
    %v597 = vpop.permute.xlu0 %596
    %v599 = vmul.f32 %v592, %v597
    %601 = vrot.lane.b32.xlu0 %v599, 32
    %v602 = vpop.permute.xlu0 %601
    %v604 = vadd.f32 %v594, %v602
    %v605 = vtanh.pop %v604
    %607 = vrot.lane.b32.xlu0 %v605, 64
    %v608 = vpop.permute.xlu0 %607
    %v610 = vmul.f32 %v592, %v608
    %612 = vrot.lane.b32.xlu0 %v610, 32
    %v613 = vpop.permute.xlu0 %612
    %v614 = vsel %vm81, %v613, 0
    %616 = vmatprep.subr.mxu0 0.0
    %617 = vmatpush1.msra.mxu0 0.0
    %618 = vmatprep.subr.mxu0 0.0
    %619 = vmatpush1.msra.mxu0 0.0
    %620 = vmatprep.subr.mxu0 0.0
    %621 = vmatpush1.msra.mxu0 0.0
    %622 = vmatprep.subr.mxu0 0.0
    %623 = vmatpush1.msra.mxu0 0.0
    %624 = vmatprep.subr.mxu0 0.0
    %625 = vmatpush1.msra.mxu0 0.0
    %626 = vmatprep.subr.mxu0 0.0
    %627 = vmatpush1.msra.mxu0 0.0
    %628 = vmatprep.subr.mxu0 0.0
    %629 = vmatpush1.msra.mxu0 0.0
    %630 = vmatprep.subr.mxu0 0.0
    %631 = vmatpush1.msra.mxu0 0.0
    %632 = vmatprep.subr.mxu0 0.0
    %633 = vmatpush1.msra.mxu0 0.0
    %634 = vmatprep.subr.mxu0 0.0
    %635 = vmatpush1.msra.mxu0 0.0
    %636 = vmatprep.subr.mxu0 0.0
    %637 = vmatpush1.msra.mxu0 0.0
    %638 = vmatprep.subr.mxu0 0.0
    %639 = vmatpush1.msra.mxu0 0.0
    %640 = vmatprep.subr.mxu0 0.0
    %641 = vmatpush1.msra.mxu0 %v306
    %642 = vmatprep.subr.mxu0 0.0
    %643 = vmatpush1.msra.mxu0 %v305
    %644 = vmatprep.subr.mxu0 0.0
    %645 = vmatpush1.msra.mxu0 %v304
    %646 = vmatprep.subr.mxu0 0.0
    %647 = vmatpush1.msra.mxu0 %v303
    %648 = vmatprep.subr.mxu0 0.0
    %649 = vmatpush2.msra.mxu0 0.0
    %650 = vmatprep.subr.mxu0 0.0
    %651 = vmatpush2.msra.mxu0 0.0
    %652 = vmatprep.subr.mxu0 0.0
    %653 = vmatpush2.msra.mxu0 0.0
    %654 = vmatprep.subr.mxu0 0.0
    %655 = vmatpush2.msra.mxu0 0.0
    %656 = vmatprep.subr.mxu0 0.0
    %657 = vmatpush2.msra.mxu0 0.0
    %658 = vmatprep.subr.mxu0 0.0
    %659 = vmatpush2.msra.mxu0 0.0
    %660 = vmatprep.subr.mxu0 0.0
    %661 = vmatpush2.msra.mxu0 0.0
    %662 = vmatprep.subr.mxu0 0.0
    %663 = vmatpush2.msra.mxu0 0.0
    %664 = vmatprep.subr.mxu0 0.0
    %665 = vmatpush2.msra.mxu0 0.0
    %666 = vmatprep.subr.mxu0 0.0
    %667 = vmatpush2.msra.mxu0 0.0
    %668 = vmatprep.subr.mxu0 0.0
    %669 = vmatpush2.msra.mxu0 0.0
    %670 = vmatprep.subr.mxu0 0.0
    %671 = vmatpush2.msra.mxu0 0.0
    %672 = vmatprep.subr.mxu0 0.0
    %673 = vmatpush2.msra.mxu0 0.0
    %674 = vmatprep.subr.mxu0 0.0
    %675 = vmatpush2.msra.mxu0 0.0
    %676 = vmatprep.subr.mxu0 0.0
    %677 = vmatpush2.msra.mxu0 0.0
    %678 = vmatprep.subr.mxu0 0.0
    %679 = vmatpush2.msra.mxu0 0.0
    %680 = vmatprep.mubr.f32.mxu0 0.0
    %681 = vmatmul.mubr.f32.gmra.mxu0 %v614
    %v682 = vpop.f32.mrf.mxu0
    %v683 = vadd.f32 0.0, %v682
    %v684 = vpop.f32.mrf.mxu0
    %685 = vdwg.mxu0
    %v686 = vadd.f32 %v280, %v683
    %v687 = vxor.u32 %v686, 2147483648
    %v688 = vmul.f32 %v687, 1.442695
    %v689 = vpow.pop %v688
    %v690 = vadd.f32 %v689, 1.0
    %v691 = vrcp.pop %v690
    %v692 = vmul.f32 1.0, %v691
    %v693 = vtanh.pop %v686
    %v694 = vmul.f32 %v692, %v604
    %696 = vrot.lane.b32.xlu0 %v693, 64
    %v697 = vpop.permute.xlu0 %696
    %v699 = vmul.f32 %v692, %v697
    %701 = vrot.lane.b32.xlu0 %v699, 32
    %v702 = vpop.permute.xlu0 %701
    %v704 = vadd.f32 %v694, %v702
    %v705 = vtanh.pop %v704
    %707 = vrot.lane.b32.xlu0 %v705, 64
    %v708 = vpop.permute.xlu0 %707
    %v710 = vmul.f32 %v692, %v708
    %712 = vrot.lane.b32.xlu0 %v710, 32
    %v713 = vpop.permute.xlu0 %712
    %v714 = vsel %vm81, %v713, 0
    %716 = vmatprep.subr.mxu0 0.0
    %717 = vmatpush1.msra.mxu0 0.0
    %718 = vmatprep.subr.mxu0 0.0
    %719 = vmatpush1.msra.mxu0 0.0
    %720 = vmatprep.subr.mxu0 0.0
    %721 = vmatpush1.msra.mxu0 0.0
    %722 = vmatprep.subr.mxu0 0.0
    %723 = vmatpush1.msra.mxu0 0.0
    %724 = vmatprep.subr.mxu0 0.0
    %725 = vmatpush1.msra.mxu0 0.0
    %726 = vmatprep.subr.mxu0 0.0
    %727 = vmatpush1.msra.mxu0 0.0
    %728 = vmatprep.subr.mxu0 0.0
    %729 = vmatpush1.msra.mxu0 0.0
    %730 = vmatprep.subr.mxu0 0.0
    %731 = vmatpush1.msra.mxu0 0.0
    %732 = vmatprep.subr.mxu0 0.0
    %733 = vmatpush1.msra.mxu0 0.0
    %734 = vmatprep.subr.mxu0 0.0
    %735 = vmatpush1.msra.mxu0 0.0
    %736 = vmatprep.subr.mxu0 0.0
    %737 = vmatpush1.msra.mxu0 0.0
    %738 = vmatprep.subr.mxu0 0.0
    %739 = vmatpush1.msra.mxu0 0.0
    %740 = vmatprep.subr.mxu0 0.0
    %741 = vmatpush1.msra.mxu0 %v306
    %742 = vmatprep.subr.mxu0 0.0
    %743 = vmatpush1.msra.mxu0 %v305
    %744 = vmatprep.subr.mxu0 0.0
    %745 = vmatpush1.msra.mxu0 %v304
    %746 = vmatprep.subr.mxu0 0.0
    %747 = vmatpush1.msra.mxu0 %v303
    %748 = vmatprep.subr.mxu0 0.0
    %749 = vmatpush2.msra.mxu0 0.0
    %750 = vmatprep.subr.mxu0 0.0
    %751 = vmatpush2.msra.mxu0 0.0
    %752 = vmatprep.subr.mxu0 0.0
    %753 = vmatpush2.msra.mxu0 0.0
    %754 = vmatprep.subr.mxu0 0.0
    %755 = vmatpush2.msra.mxu0 0.0
    %756 = vmatprep.subr.mxu0 0.0
    %757 = vmatpush2.msra.mxu0 0.0
    %758 = vmatprep.subr.mxu0 0.0
    %759 = vmatpush2.msra.mxu0 0.0
    %760 = vmatprep.subr.mxu0 0.0
    %761 = vmatpush2.msra.mxu0 0.0
    %762 = vmatprep.subr.mxu0 0.0
    %763 = vmatpush2.msra.mxu0 0.0
    %764 = vmatprep.subr.mxu0 0.0
    %765 = vmatpush2.msra.mxu0 0.0
    %766 = vmatprep.subr.mxu0 0.0
    %767 = vmatpush2.msra.mxu0 0.0
    %768 = vmatprep.subr.mxu0 0.0
    %769 = vmatpush2.msra.mxu0 0.0
    %770 = vmatprep.subr.mxu0 0.0
    %771 = vmatpush2.msra.mxu0 0.0
    %772 = vmatprep.subr.mxu0 0.0
    %773 = vmatpush2.msra.mxu0 0.0
    %774 = vmatprep.subr.mxu0 0.0
    %775 = vmatpush2.msra.mxu0 0.0
    %776 = vmatprep.subr.mxu0 0.0
    %777 = vmatpush2.msra.mxu0 0.0
    %778 = vmatprep.subr.mxu0 0.0
    %779 = vmatpush2.msra.mxu0 0.0
    %780 = vmatprep.mubr.f32.mxu0 0.0
    %781 = vmatmul.mubr.f32.gmra.mxu0 %v714
    %v782 = vpop.f32.mrf.mxu0
    %v783 = vadd.f32 0.0, %v782
    %v784 = vpop.f32.mrf.mxu0
    %785 = vdwg.mxu0
    %v786 = vadd.f32 %v285, %v783
    %v787 = vxor.u32 %v786, 2147483648
    %v788 = vmul.f32 %v787, 1.442695
    %v789 = vpow.pop %v788
    %v790 = vadd.f32 %v789, 1.0
    %v791 = vrcp.pop %v790
    %v792 = vmul.f32 1.0, %v791
    %v793 = vtanh.pop %v786
    %v794 = vmul.f32 %v792, %v704
    %796 = vrot.lane.b32.xlu0 %v793, 64
    %v797 = vpop.permute.xlu0 %796
    %v799 = vmul.f32 %v792, %v797
    %801 = vrot.lane.b32.xlu0 %v799, 32
    %v802 = vpop.permute.xlu0 %801
    %v804 = vadd.f32 %v794, %v802
    %v805 = vtanh.pop %v804
    %807 = vrot.lane.b32.xlu0 %v805, 64
    %v808 = vpop.permute.xlu0 %807
    %v810 = vmul.f32 %v792, %v808
    %812 = vrot.lane.b32.xlu0 %v810, 32
    %v813 = vpop.permute.xlu0 %812
    %v814 = vsel %vm81, %v813, 0
    %816 = vmatprep.subr.mxu0 0.0
    %817 = vmatpush1.msra.mxu0 0.0
    %818 = vmatprep.subr.mxu0 0.0
    %819 = vmatpush1.msra.mxu0 0.0
    %820 = vmatprep.subr.mxu0 0.0
    %821 = vmatpush1.msra.mxu0 0.0
    %822 = vmatprep.subr.mxu0 0.0
    %823 = vmatpush1.msra.mxu0 0.0
    %824 = vmatprep.subr.mxu0 0.0
    %825 = vmatpush1.msra.mxu0 0.0
    %826 = vmatprep.subr.mxu0 0.0
    %827 = vmatpush1.msra.mxu0 0.0
    %828 = vmatprep.subr.mxu0 0.0
    %829 = vmatpush1.msra.mxu0 0.0
    %830 = vmatprep.subr.mxu0 0.0
    %831 = vmatpush1.msra.mxu0 0.0
    %832 = vmatprep.subr.mxu0 0.0
    %833 = vmatpush1.msra.mxu0 0.0
    %834 = vmatprep.subr.mxu0 0.0
    %835 = vmatpush1.msra.mxu0 0.0
    %836 = vmatprep.subr.mxu0 0.0
    %837 = vmatpush1.msra.mxu0 0.0
    %838 = vmatprep.subr.mxu0 0.0
    %839 = vmatpush1.msra.mxu0 0.0
    %840 = vmatprep.subr.mxu0 0.0
    %841 = vmatpush1.msra.mxu0 %v306
    %842 = vmatprep.subr.mxu0 0.0
    %843 = vmatpush1.msra.mxu0 %v305
    %844 = vmatprep.subr.mxu0 0.0
    %845 = vmatpush1.msra.mxu0 %v304
    %846 = vmatprep.subr.mxu0 0.0
    %847 = vmatpush1.msra.mxu0 %v303
    %848 = vmatprep.subr.mxu0 0.0
    %849 = vmatpush2.msra.mxu0 0.0
    %850 = vmatprep.subr.mxu0 0.0
    %851 = vmatpush2.msra.mxu0 0.0
    %852 = vmatprep.subr.mxu0 0.0
    %853 = vmatpush2.msra.mxu0 0.0
    %854 = vmatprep.subr.mxu0 0.0
    %855 = vmatpush2.msra.mxu0 0.0
    %856 = vmatprep.subr.mxu0 0.0
    %857 = vmatpush2.msra.mxu0 0.0
    %858 = vmatprep.subr.mxu0 0.0
    %859 = vmatpush2.msra.mxu0 0.0
    %860 = vmatprep.subr.mxu0 0.0
    %861 = vmatpush2.msra.mxu0 0.0
    %862 = vmatprep.subr.mxu0 0.0
    %863 = vmatpush2.msra.mxu0 0.0
    %864 = vmatprep.subr.mxu0 0.0
    %865 = vmatpush2.msra.mxu0 0.0
    %866 = vmatprep.subr.mxu0 0.0
    %867 = vmatpush2.msra.mxu0 0.0
    %868 = vmatprep.subr.mxu0 0.0
    %869 = vmatpush2.msra.mxu0 0.0
    %870 = vmatprep.subr.mxu0 0.0
    %871 = vmatpush2.msra.mxu0 0.0
    %872 = vmatprep.subr.mxu0 0.0
    %873 = vmatpush2.msra.mxu0 0.0
    %874 = vmatprep.subr.mxu0 0.0
    %875 = vmatpush2.msra.mxu0 0.0
    %876 = vmatprep.subr.mxu0 0.0
    %877 = vmatpush2.msra.mxu0 0.0
    %878 = vmatprep.subr.mxu0 0.0
    %879 = vmatpush2.msra.mxu0 0.0
    %880 = vmatprep.mubr.f32.mxu0 0.0
    %881 = vmatmul.mubr.f32.gmra.mxu0 %v814
    %v882 = vpop.f32.mrf.mxu0
    %v883 = vadd.f32 0.0, %v882
    %v884 = vpop.f32.mrf.mxu0
    %885 = vdwg.mxu0
    %v886 = vadd.f32 %v290, %v883
    %v887 = vxor.u32 %v886, 2147483648
    %v888 = vmul.f32 %v887, 1.442695
    %v889 = vpow.pop %v888
    %v890 = vadd.f32 %v889, 1.0
    %v891 = vrcp.pop %v890
    %v892 = vmul.f32 1.0, %v891
    %v893 = vtanh.pop %v886
    %v894 = vmul.f32 %v892, %v804
    %896 = vrot.lane.b32.xlu0 %v893, 64
    %v897 = vpop.permute.xlu0 %896
    %v899 = vmul.f32 %v892, %v897
    %901 = vrot.lane.b32.xlu0 %v899, 32
    %v902 = vpop.permute.xlu0 %901
    %v904 = vadd.f32 %v894, %v902
    %v905 = vtanh.pop %v904
    %907 = vrot.lane.b32.xlu0 %v905, 64
    %v908 = vpop.permute.xlu0 %907
    %v910 = vmul.f32 %v892, %v908
    %912 = vrot.lane.b32.xlu0 %v910, 32
    %v913 = vpop.permute.xlu0 %912
    %v914 = vsel %vm81, %v913, 0
    %916 = vmatprep.subr.mxu0 0.0
    %917 = vmatpush1.msra.mxu0 0.0
    %918 = vmatprep.subr.mxu0 0.0
    %919 = vmatpush1.msra.mxu0 0.0
    %920 = vmatprep.subr.mxu0 0.0
    %921 = vmatpush1.msra.mxu0 0.0
    %922 = vmatprep.subr.mxu0 0.0
    %923 = vmatpush1.msra.mxu0 0.0
    %924 = vmatprep.subr.mxu0 0.0
    %925 = vmatpush1.msra.mxu0 0.0
    %926 = vmatprep.subr.mxu0 0.0
    %927 = vmatpush1.msra.mxu0 0.0
    %928 = vmatprep.subr.mxu0 0.0
    %929 = vmatpush1.msra.mxu0 0.0
    %930 = vmatprep.subr.mxu0 0.0
    %931 = vmatpush1.msra.mxu0 0.0
    %932 = vmatprep.subr.mxu0 0.0
    %933 = vmatpush1.msra.mxu0 0.0
    %934 = vmatprep.subr.mxu0 0.0
    %935 = vmatpush1.msra.mxu0 0.0
    %936 = vmatprep.subr.mxu0 0.0
    %937 = vmatpush1.msra.mxu0 0.0
    %938 = vmatprep.subr.mxu0 0.0
    %939 = vmatpush1.msra.mxu0 0.0
    %940 = vmatprep.subr.mxu0 0.0
    %941 = vmatpush1.msra.mxu0 %v306
    %942 = vmatprep.subr.mxu0 0.0
    %943 = vmatpush1.msra.mxu0 %v305
    %944 = vmatprep.subr.mxu0 0.0
    %945 = vmatpush1.msra.mxu0 %v304
    %946 = vmatprep.subr.mxu0 0.0
    %947 = vmatpush1.msra.mxu0 %v303
    %948 = vmatprep.subr.mxu0 0.0
    %949 = vmatpush2.msra.mxu0 0.0
    %950 = vmatprep.subr.mxu0 0.0
    %951 = vmatpush2.msra.mxu0 0.0
    %952 = vmatprep.subr.mxu0 0.0
    %953 = vmatpush2.msra.mxu0 0.0
    %954 = vmatprep.subr.mxu0 0.0
    %955 = vmatpush2.msra.mxu0 0.0
    %956 = vmatprep.subr.mxu0 0.0
    %957 = vmatpush2.msra.mxu0 0.0
    %958 = vmatprep.subr.mxu0 0.0
    %959 = vmatpush2.msra.mxu0 0.0
    %960 = vmatprep.subr.mxu0 0.0
    %961 = vmatpush2.msra.mxu0 0.0
    %962 = vmatprep.subr.mxu0 0.0
    %963 = vmatpush2.msra.mxu0 0.0
    %964 = vmatprep.subr.mxu0 0.0
    %965 = vmatpush2.msra.mxu0 0.0
    %966 = vmatprep.subr.mxu0 0.0
    %967 = vmatpush2.msra.mxu0 0.0
    %968 = vmatprep.subr.mxu0 0.0
    %969 = vmatpush2.msra.mxu0 0.0
    %970 = vmatprep.subr.mxu0 0.0
    %971 = vmatpush2.msra.mxu0 0.0
    %972 = vmatprep.subr.mxu0 0.0
    %973 = vmatpush2.msra.mxu0 0.0
    %974 = vmatprep.subr.mxu0 0.0
    %975 = vmatpush2.msra.mxu0 0.0
    %976 = vmatprep.subr.mxu0 0.0
    %977 = vmatpush2.msra.mxu0 0.0
    %978 = vmatprep.subr.mxu0 0.0
    %979 = vmatpush2.msra.mxu0 0.0
    %980 = vmatprep.mubr.f32.mxu0 0.0
    %981 = vmatmul.mubr.f32.gmra.mxu0 %v914
    %v982 = vpop.f32.mrf.mxu0
    %v983 = vadd.f32 0.0, %v982
    %v984 = vpop.f32.mrf.mxu0
    %985 = vdwg.mxu0
    %v986 = vadd.f32 %v295, %v983
    %v987 = vxor.u32 %v986, 2147483648
    %v988 = vmul.f32 %v987, 1.442695
    %v989 = vpow.pop %v988
    %v990 = vadd.f32 %v989, 1.0
    %v991 = vrcp.pop %v990
    %v992 = vmul.f32 1.0, %v991
    %v993 = vtanh.pop %v986
    %v994 = vmul.f32 %v992, %v904
    %996 = vrot.lane.b32.xlu0 %v993, 64
    %v997 = vpop.permute.xlu0 %996
    %v999 = vmul.f32 %v992, %v997
    %1001 = vrot.lane.b32.xlu0 %v999, 32
    %v1002 = vpop.permute.xlu0 %1001
    %v1004 = vadd.f32 %v994, %v1002
    %v1005 = vtanh.pop %v1004
    %1007 = vrot.lane.b32.xlu0 %v1005, 64
    %v1008 = vpop.permute.xlu0 %1007
    %v1010 = vmul.f32 %v992, %v1008
    %1012 = vrot.lane.b32.xlu0 %v1010, 32
    %v1013 = vpop.permute.xlu0 %1012
    %v1014 = vsel %vm81, %v1013, 0
    %1016 = vmatprep.subr.mxu0 0.0
    %1017 = vmatpush1.msra.mxu0 0.0
    %1018 = vmatprep.subr.mxu0 0.0
    %1019 = vmatpush1.msra.mxu0 0.0
    %1020 = vmatprep.subr.mxu0 0.0
    %1021 = vmatpush1.msra.mxu0 0.0
    %1022 = vmatprep.subr.mxu0 0.0
    %1023 = vmatpush1.msra.mxu0 0.0
    %1024 = vmatprep.subr.mxu0 0.0
    %1025 = vmatpush1.msra.mxu0 0.0
    %1026 = vmatprep.subr.mxu0 0.0
    %1027 = vmatpush1.msra.mxu0 0.0
    %1028 = vmatprep.subr.mxu0 0.0
    %1029 = vmatpush1.msra.mxu0 0.0
    %1030 = vmatprep.subr.mxu0 0.0
    %1031 = vmatpush1.msra.mxu0 0.0
    %1032 = vmatprep.subr.mxu0 0.0
    %1033 = vmatpush1.msra.mxu0 0.0
    %1034 = vmatprep.subr.mxu0 0.0
    %1035 = vmatpush1.msra.mxu0 0.0
    %1036 = vmatprep.subr.mxu0 0.0
    %1037 = vmatpush1.msra.mxu0 0.0
    %1038 = vmatprep.subr.mxu0 0.0
    %1039 = vmatpush1.msra.mxu0 0.0
    %1040 = vmatprep.subr.mxu0 0.0
    %1041 = vmatpush1.msra.mxu0 %v306
    %1042 = vmatprep.subr.mxu0 0.0
    %1043 = vmatpush1.msra.mxu0 %v305
    %1044 = vmatprep.subr.mxu0 0.0
    %1045 = vmatpush1.msra.mxu0 %v304
    %1046 = vmatprep.subr.mxu0 0.0
    %1047 = vmatpush1.msra.mxu0 %v303
    %1048 = vmatprep.subr.mxu0 0.0
    %1049 = vmatpush2.msra.mxu0 0.0
    %1050 = vmatprep.subr.mxu0 0.0
    %1051 = vmatpush2.msra.mxu0 0.0
    %1052 = vmatprep.subr.mxu0 0.0
    %1053 = vmatpush2.msra.mxu0 0.0
    %1054 = vmatprep.subr.mxu0 0.0
    %1055 = vmatpush2.msra.mxu0 0.0
    %1056 = vmatprep.subr.mxu0 0.0
    %1057 = vmatpush2.msra.mxu0 0.0
    %1058 = vmatprep.subr.mxu0 0.0
    %1059 = vmatpush2.msra.mxu0 0.0
    %1060 = vmatprep.subr.mxu0 0.0
    %1061 = vmatpush2.msra.mxu0 0.0
    %1062 = vmatprep.subr.mxu0 0.0
    %1063 = vmatpush2.msra.mxu0 0.0
    %1064 = vmatprep.subr.mxu0 0.0
    %1065 = vmatpush2.msra.mxu0 0.0
    %1066 = vmatprep.subr.mxu0 0.0
    %1067 = vmatpush2.msra.mxu0 0.0
    %1068 = vmatprep.subr.mxu0 0.0
    %1069 = vmatpush2.msra.mxu0 0.0
    %1070 = vmatprep.subr.mxu0 0.0
    %1071 = vmatpush2.msra.mxu0 0.0
    %1072 = vmatprep.subr.mxu0 0.0
    %1073 = vmatpush2.msra.mxu0 0.0
    %1074 = vmatprep.subr.mxu0 0.0
    %1075 = vmatpush2.msra.mxu0 0.0
    %1076 = vmatprep.subr.mxu0 0.0
    %1077 = vmatpush2.msra.mxu0 0.0
    %1078 = vmatprep.subr.mxu0 0.0
    %1079 = vmatpush2.msra.mxu0 0.0
    %1080 = vmatprep.mubr.f32.mxu0 0.0
    %1081 = vmatmul.mubr.f32.gmra.mxu0 %v1014
    %v1082 = vpop.f32.mrf.mxu0
    %v1083 = vadd.f32 0.0, %v1082
    %v1084 = vpop.f32.mrf.mxu0
    %1085 = vdwg.mxu0
    %v1086 = vadd.f32 %v300, %v1083
    %v1087 = vxor.u32 %v1086, 2147483648
    %v1088 = vmul.f32 %v1087, 1.442695
    %v1089 = vpow.pop %v1088
    %v1090 = vadd.f32 %v1089, 1.0
    %v1091 = vrcp.pop %v1090
    %v1092 = vmul.f32 1.0, %v1091
    %v1093 = vtanh.pop %v1086
    %v1094 = vmul.f32 %v1092, %v1004
    %1096 = vrot.lane.b32.xlu0 %v1093, 64
    %v1097 = vpop.permute.xlu0 %1096
    %v1099 = vmul.f32 %v1092, %v1097
    %1101 = vrot.lane.b32.xlu0 %v1099, 32
    %v1102 = vpop.permute.xlu0 %1101
    %v1104 = vadd.f32 %v1094, %v1102
    %v1105 = vtanh.pop %v1104
    %1107 = vrot.lane.b32.xlu0 %v1105, 64
    %v1108 = vpop.permute.xlu0 %1107
    %v1110 = vmul.f32 %v1092, %v1108
    %1112 = vrot.lane.b32.xlu0 %v1110, 32
    %v1113 = vpop.permute.xlu0 %1112
    %1115 = vst.msk [vmem:[%s13] sm:$0xff] %vm81, %v1113
    %1117 = vrot.lane.b32.xlu0 %v1104, 96
    %v1118 = vpop.permute.xlu0 %1117
    %1120 = vst.msk [vmem:[%s14] sm:$0xff] %vm81, %v1118
    %v1121 = vld [vmem:[%s5] sm:$0xff]
    %v1122 = vld [vmem:[%s5 + $0x8] sm:$0xff]
    %v1123 = vld [vmem:[%s5 + $0x10] sm:$0xff]
    %v1124 = vld [vmem:[%s5 + $0x18] sm:$0xff]
    %v1125 = vld [vmem:[%s7] sm:$0x1]
    %v1127 = vlaneseq
    %v1128 = vshrl.u32 %v1127, 7
    %v1129 = vsub.s32 0, %v1128
    %v1130 = vrot.slane %v1125, %v1129
    %v1132 = vsel %vm81, %v1113, 0
    %1134 = vmatprep.subr.mxu0 0.0
    %1135 = vmatpush1.msra.mxu0 0.0
    %1136 = vmatprep.subr.mxu0 0.0
    %1137 = vmatpush1.msra.mxu0 0.0
    %1138 = vmatprep.subr.mxu0 0.0
    %1139 = vmatpush1.msra.mxu0 0.0
    %1140 = vmatprep.subr.mxu0 0.0
    %1141 = vmatpush1.msra.mxu0 0.0
    %1142 = vmatprep.subr.mxu0 0.0
    %1143 = vmatpush1.msra.mxu0 0.0
    %1144 = vmatprep.subr.mxu0 0.0
    %1145 = vmatpush1.msra.mxu0 0.0
    %1146 = vmatprep.subr.mxu0 0.0
    %1147 = vmatpush1.msra.mxu0 0.0
    %1148 = vmatprep.subr.mxu0 0.0
    %1149 = vmatpush1.msra.mxu0 0.0
    %1150 = vmatprep.subr.mxu0 0.0
    %1151 = vmatpush1.msra.mxu0 0.0
    %1152 = vmatprep.subr.mxu0 0.0
    %1153 = vmatpush1.msra.mxu0 0.0
    %1154 = vmatprep.subr.mxu0 0.0
    %1155 = vmatpush1.msra.mxu0 0.0
    %1156 = vmatprep.subr.mxu0 0.0
    %1157 = vmatpush1.msra.mxu0 0.0
    %1158 = vmatprep.subr.mxu0 0.0
    %1159 = vmatpush1.msra.mxu0 %v1124
    %1160 = vmatprep.subr.mxu0 0.0
    %1161 = vmatpush1.msra.mxu0 %v1123
    %1162 = vmatprep.subr.mxu0 0.0
    %1163 = vmatpush1.msra.mxu0 %v1122
    %1164 = vmatprep.subr.mxu0 0.0
    %1165 = vmatpush1.msra.mxu0 %v1121
    %1166 = vmatprep.subr.mxu0 0.0
    %1167 = vmatpush2.msra.mxu0 0.0
    %1168 = vmatprep.subr.mxu0 0.0
    %1169 = vmatpush2.msra.mxu0 0.0
    %1170 = vmatprep.subr.mxu0 0.0
    %1171 = vmatpush2.msra.mxu0 0.0
    %1172 = vmatprep.subr.mxu0 0.0
    %1173 = vmatpush2.msra.mxu0 0.0
    %1174 = vmatprep.subr.mxu0 0.0
    %1175 = vmatpush2.msra.mxu0 0.0
    %1176 = vmatprep.subr.mxu0 0.0
    %1177 = vmatpush2.msra.mxu0 0.0
    %1178 = vmatprep.subr.mxu0 0.0
    %1179 = vmatpush2.msra.mxu0 0.0
    %1180 = vmatprep.subr.mxu0 0.0
    %1181 = vmatpush2.msra.mxu0 0.0
    %1182 = vmatprep.subr.mxu0 0.0
    %1183 = vmatpush2.msra.mxu0 0.0
    %1184 = vmatprep.subr.mxu0 0.0
    %1185 = vmatpush2.msra.mxu0 0.0
    %1186 = vmatprep.subr.mxu0 0.0
    %1187 = vmatpush2.msra.mxu0 0.0
    %1188 = vmatprep.subr.mxu0 0.0
    %1189 = vmatpush2.msra.mxu0 0.0
    %1190 = vmatprep.subr.mxu0 0.0
    %1191 = vmatpush2.msra.mxu0 0.0
    %1192 = vmatprep.subr.mxu0 0.0
    %1193 = vmatpush2.msra.mxu0 0.0
    %1194 = vmatprep.subr.mxu0 0.0
    %1195 = vmatpush2.msra.mxu0 0.0
    %1196 = vmatprep.subr.mxu0 0.0
    %1197 = vmatpush2.msra.mxu0 0.0
    %1198 = vmatprep.mubr.f32.mxu0 0.0
    %1199 = vmatmul.mubr.f32.gmra.mxu0 %v414
    %v1200 = vpop.f32.mrf.mxu0
    %v1201 = vadd.f32 %v1130, %v1200
    %v1202 = vpop.f32.mrf.mxu0
    %1203 = vmatprep.mubr.f32.mxu0 0.0
    %1204 = vmatmul.mubr.f32.gmra.mxu0 %v514
    %v1205 = vpop.f32.mrf.mxu0
    %v1206 = vadd.f32 %v1130, %v1205
    %v1207 = vpop.f32.mrf.mxu0
    %1208 = vmatprep.mubr.f32.mxu0 0.0
    %1209 = vmatmul.mubr.f32.gmra.mxu0 %v614
    %v1210 = vpop.f32.mrf.mxu0
    %v1211 = vadd.f32 %v1130, %v1210
    %v1212 = vpop.f32.mrf.mxu0
    %1213 = vmatprep.mubr.f32.mxu0 0.0
    %1214 = vmatmul.mubr.f32.gmra.mxu0 %v714
    %v1215 = vpop.f32.mrf.mxu0
    %v1216 = vadd.f32 %v1130, %v1215
    %v1217 = vpop.f32.mrf.mxu0
    %1218 = vmatprep.mubr.f32.mxu0 0.0
    %1219 = vmatmul.mubr.f32.gmra.mxu0 %v814
    %v1220 = vpop.f32.mrf.mxu0
    %v1221 = vadd.f32 %v1130, %v1220
    %v1222 = vpop.f32.mrf.mxu0
    %1223 = vmatprep.mubr.f32.mxu0 0.0
    %1224 = vmatmul.mubr.f32.gmra.mxu0 %v914
    %v1225 = vpop.f32.mrf.mxu0
    %v1226 = vadd.f32 %v1130, %v1225
    %v1227 = vpop.f32.mrf.mxu0
    %1228 = vmatprep.mubr.f32.mxu0 0.0
    %1229 = vmatmul.mubr.f32.gmra.mxu0 %v1014
    %v1230 = vpop.f32.mrf.mxu0
    %v1231 = vadd.f32 %v1130, %v1230
    %v1232 = vpop.f32.mrf.mxu0
    %1233 = vmatprep.mubr.f32.mxu0 0.0
    %1234 = vmatmul.mubr.f32.gmra.mxu0 %v1132
    %v1235 = vpop.f32.mrf.mxu0
    %v1236 = vadd.f32 %v1130, %v1235
    %v1237 = vpop.f32.mrf.mxu0
    %1238 = vdwg.mxu0
    %v1239 = vld [vmem:[%s6] sm:$0xff]
    %v1240 = vld [vmem:[%s6 + $0x8] sm:$0xff]
    %v1241 = vld [vmem:[%s6 + $0x10] sm:$0xff]
    %v1242 = vld [vmem:[%s6 + $0x18] sm:$0xff]
    %s1243 = scalar_lea.vmem %s8, 8
    %v1244 = vld [vmem:[%s1243] sm:$0xff]
    %s1245 = scalar_lea.vmem %s9, 8
    %v1246 = vld [vmem:[%s1245] sm:$0xff]
    %v1248 = vsel %vm81, %v1244, 0
    %1250 = vmatprep.subr.mxu0 0.0
    %1251 = vmatpush1.msra.mxu0 0.0
    %1252 = vmatprep.subr.mxu0 0.0
    %1253 = vmatpush1.msra.mxu0 0.0
    %1254 = vmatprep.subr.mxu0 0.0
    %1255 = vmatpush1.msra.mxu0 0.0
    %1256 = vmatprep.subr.mxu0 0.0
    %1257 = vmatpush1.msra.mxu0 0.0
    %1258 = vmatprep.subr.mxu0 0.0
    %1259 = vmatpush1.msra.mxu0 0.0
    %1260 = vmatprep.subr.mxu0 0.0
    %1261 = vmatpush1.msra.mxu0 0.0
    %1262 = vmatprep.subr.mxu0 0.0
    %1263 = vmatpush1.msra.mxu0 0.0
    %1264 = vmatprep.subr.mxu0 0.0
    %1265 = vmatpush1.msra.mxu0 0.0
    %1266 = vmatprep.subr.mxu0 0.0
    %1267 = vmatpush1.msra.mxu0 0.0
    %1268 = vmatprep.subr.mxu0 0.0
    %1269 = vmatpush1.msra.mxu0 0.0
    %1270 = vmatprep.subr.mxu0 0.0
    %1271 = vmatpush1.msra.mxu0 0.0
    %1272 = vmatprep.subr.mxu0 0.0
    %1273 = vmatpush1.msra.mxu0 0.0
    %1274 = vmatprep.subr.mxu0 0.0
    %1275 = vmatpush1.msra.mxu0 %v1242
    %1276 = vmatprep.subr.mxu0 0.0
    %1277 = vmatpush1.msra.mxu0 %v1241
    %1278 = vmatprep.subr.mxu0 0.0
    %1279 = vmatpush1.msra.mxu0 %v1240
    %1280 = vmatprep.subr.mxu0 0.0
    %1281 = vmatpush1.msra.mxu0 %v1239
    %1282 = vmatprep.subr.mxu0 0.0
    %1283 = vmatpush2.msra.mxu0 0.0
    %1284 = vmatprep.subr.mxu0 0.0
    %1285 = vmatpush2.msra.mxu0 0.0
    %1286 = vmatprep.subr.mxu0 0.0
    %1287 = vmatpush2.msra.mxu0 0.0
    %1288 = vmatprep.subr.mxu0 0.0
    %1289 = vmatpush2.msra.mxu0 0.0
    %1290 = vmatprep.subr.mxu0 0.0
    %1291 = vmatpush2.msra.mxu0 0.0
    %1292 = vmatprep.subr.mxu0 0.0
    %1293 = vmatpush2.msra.mxu0 0.0
    %1294 = vmatprep.subr.mxu0 0.0
    %1295 = vmatpush2.msra.mxu0 0.0
    %1296 = vmatprep.subr.mxu0 0.0
    %1297 = vmatpush2.msra.mxu0 0.0
    %1298 = vmatprep.subr.mxu0 0.0
    %1299 = vmatpush2.msra.mxu0 0.0
    %1300 = vmatprep.subr.mxu0 0.0
    %1301 = vmatpush2.msra.mxu0 0.0
    %1302 = vmatprep.subr.mxu0 0.0
    %1303 = vmatpush2.msra.mxu0 0.0
    %1304 = vmatprep.subr.mxu0 0.0
    %1305 = vmatpush2.msra.mxu0 0.0
    %1306 = vmatprep.subr.mxu0 0.0
    %1307 = vmatpush2.msra.mxu0 0.0
    %1308 = vmatprep.subr.mxu0 0.0
    %1309 = vmatpush2.msra.mxu0 0.0
    %1310 = vmatprep.subr.mxu0 0.0
    %1311 = vmatpush2.msra.mxu0 0.0
    %1312 = vmatprep.subr.mxu0 0.0
    %1313 = vmatpush2.msra.mxu0 0.0
    %1314 = vmatprep.mubr.f32.mxu0 0.0
    %1315 = vmatmul.mubr.f32.gmra.mxu0 %v1248
    %v1316 = vpop.f32.mrf.mxu0
    %v1317 = vadd.f32 0.0, %v1316
    %v1318 = vpop.f32.mrf.mxu0
    %1319 = vdwg.mxu0
    %v1320 = vadd.f32 %v1201, %v1317
    %v1321 = vxor.u32 %v1320, 2147483648
    %v1322 = vmul.f32 %v1321, 1.442695
    %v1323 = vpow.pop %v1322
    %v1324 = vadd.f32 %v1323, 1.0
    %v1325 = vrcp.pop %v1324
    %v1326 = vmul.f32 1.0, %v1325
    %v1327 = vtanh.pop %v1320
    %1329 = vrot.lane.b32.xlu0 %v1246, 32
    %v1330 = vpop.permute.xlu0 %1329
    %v1332 = vmul.f32 %v1326, %v1330
    %1334 = vrot.lane.b32.xlu0 %v1327, 64
    %v1335 = vpop.permute.xlu0 %1334
    %v1337 = vmul.f32 %v1326, %v1335
    %1339 = vrot.lane.b32.xlu0 %v1337, 32
    %v1340 = vpop.permute.xlu0 %1339
    %v1342 = vadd.f32 %v1332, %v1340
    %v1343 = vtanh.pop %v1342
    %1345 = vrot.lane.b32.xlu0 %v1343, 64
    %v1346 = vpop.permute.xlu0 %1345
    %v1348 = vmul.f32 %v1326, %v1346
    %1350 = vrot.lane.b32.xlu0 %v1348, 32
    %v1351 = vpop.permute.xlu0 %1350
    %v1352 = vsel %vm81, %v1351, 0
    %1354 = vmatprep.subr.mxu0 0.0
    %1355 = vmatpush1.msra.mxu0 0.0
    %1356 = vmatprep.subr.mxu0 0.0
    %1357 = vmatpush1.msra.mxu0 0.0
    %1358 = vmatprep.subr.mxu0 0.0
    %1359 = vmatpush1.msra.mxu0 0.0
    %1360 = vmatprep.subr.mxu0 0.0
    %1361 = vmatpush1.msra.mxu0 0.0
    %1362 = vmatprep.subr.mxu0 0.0
    %1363 = vmatpush1.msra.mxu0 0.0
    %1364 = vmatprep.subr.mxu0 0.0
    %1365 = vmatpush1.msra.mxu0 0.0
    %1366 = vmatprep.subr.mxu0 0.0
    %1367 = vmatpush1.msra.mxu0 0.0
    %1368 = vmatprep.subr.mxu0 0.0
    %1369 = vmatpush1.msra.mxu0 0.0
    %1370 = vmatprep.subr.mxu0 0.0
    %1371 = vmatpush1.msra.mxu0 0.0
    %1372 = vmatprep.subr.mxu0 0.0
    %1373 = vmatpush1.msra.mxu0 0.0
    %1374 = vmatprep.subr.mxu0 0.0
    %1375 = vmatpush1.msra.mxu0 0.0
    %1376 = vmatprep.subr.mxu0 0.0
    %1377 = vmatpush1.msra.mxu0 0.0
    %1378 = vmatprep.subr.mxu0 0.0
    %1379 = vmatpush1.msra.mxu0 %v1242
    %1380 = vmatprep.subr.mxu0 0.0
    %1381 = vmatpush1.msra.mxu0 %v1241
    %1382 = vmatprep.subr.mxu0 0.0
    %1383 = vmatpush1.msra.mxu0 %v1240
    %1384 = vmatprep.subr.mxu0 0.0
    %1385 = vmatpush1.msra.mxu0 %v1239
    %1386 = vmatprep.subr.mxu0 0.0
    %1387 = vmatpush2.msra.mxu0 0.0
    %1388 = vmatprep.subr.mxu0 0.0
    %1389 = vmatpush2.msra.mxu0 0.0
    %1390 = vmatprep.subr.mxu0 0.0
    %1391 = vmatpush2.msra.mxu0 0.0
    %1392 = vmatprep.subr.mxu0 0.0
    %1393 = vmatpush2.msra.mxu0 0.0
    %1394 = vmatprep.subr.mxu0 0.0
    %1395 = vmatpush2.msra.mxu0 0.0
    %1396 = vmatprep.subr.mxu0 0.0
    %1397 = vmatpush2.msra.mxu0 0.0
    %1398 = vmatprep.subr.mxu0 0.0
    %1399 = vmatpush2.msra.mxu0 0.0
    %1400 = vmatprep.subr.mxu0 0.0
    %1401 = vmatpush2.msra.mxu0 0.0
    %1402 = vmatprep.subr.mxu0 0.0
    %1403 = vmatpush2.msra.mxu0 0.0
    %1404 = vmatprep.subr.mxu0 0.0
    %1405 = vmatpush2.msra.mxu0 0.0
    %1406 = vmatprep.subr.mxu0 0.0
    %1407 = vmatpush2.msra.mxu0 0.0
    %1408 = vmatprep.subr.mxu0 0.0
    %1409 = vmatpush2.msra.mxu0 0.0
    %1410 = vmatprep.subr.mxu0 0.0
    %1411 = vmatpush2.msra.mxu0 0.0
    %1412 = vmatprep.subr.mxu0 0.0
    %1413 = vmatpush2.msra.mxu0 0.0
    %1414 = vmatprep.subr.mxu0 0.0
    %1415 = vmatpush2.msra.mxu0 0.0
    %1416 = vmatprep.subr.mxu0 0.0
    %1417 = vmatpush2.msra.mxu0 0.0
    %1418 = vmatprep.mubr.f32.mxu0 0.0
    %1419 = vmatmul.mubr.f32.gmra.mxu0 %v1352
    %v1420 = vpop.f32.mrf.mxu0
    %v1421 = vadd.f32 0.0, %v1420
    %v1422 = vpop.f32.mrf.mxu0
    %1423 = vdwg.mxu0
    %v1424 = vadd.f32 %v1206, %v1421
    %v1425 = vxor.u32 %v1424, 2147483648
    %v1426 = vmul.f32 %v1425, 1.442695
    %v1427 = vpow.pop %v1426
    %v1428 = vadd.f32 %v1427, 1.0
    %v1429 = vrcp.pop %v1428
    %v1430 = vmul.f32 1.0, %v1429
    %v1431 = vtanh.pop %v1424
    %v1432 = vmul.f32 %v1430, %v1342
    %1434 = vrot.lane.b32.xlu0 %v1431, 64
    %v1435 = vpop.permute.xlu0 %1434
    %v1437 = vmul.f32 %v1430, %v1435
    %1439 = vrot.lane.b32.xlu0 %v1437, 32
    %v1440 = vpop.permute.xlu0 %1439
    %v1442 = vadd.f32 %v1432, %v1440
    %v1443 = vtanh.pop %v1442
    %1445 = vrot.lane.b32.xlu0 %v1443, 64
    %v1446 = vpop.permute.xlu0 %1445
    %v1448 = vmul.f32 %v1430, %v1446
    %1450 = vrot.lane.b32.xlu0 %v1448, 32
    %v1451 = vpop.permute.xlu0 %1450
    %v1452 = vsel %vm81, %v1451, 0
    %1454 = vmatprep.subr.mxu0 0.0
    %1455 = vmatpush1.msra.mxu0 0.0
    %1456 = vmatprep.subr.mxu0 0.0
    %1457 = vmatpush1.msra.mxu0 0.0
    %1458 = vmatprep.subr.mxu0 0.0
    %1459 = vmatpush1.msra.mxu0 0.0
    %1460 = vmatprep.subr.mxu0 0.0
    %1461 = vmatpush1.msra.mxu0 0.0
    %1462 = vmatprep.subr.mxu0 0.0
    %1463 = vmatpush1.msra.mxu0 0.0
    %1464 = vmatprep.subr.mxu0 0.0
    %1465 = vmatpush1.msra.mxu0 0.0
    %1466 = vmatprep.subr.mxu0 0.0
    %1467 = vmatpush1.msra.mxu0 0.0
    %1468 = vmatprep.subr.mxu0 0.0
    %1469 = vmatpush1.msra.mxu0 0.0
    %1470 = vmatprep.subr.mxu0 0.0
    %1471 = vmatpush1.msra.mxu0 0.0
    %1472 = vmatprep.subr.mxu0 0.0
    %1473 = vmatpush1.msra.mxu0 0.0
    %1474 = vmatprep.subr.mxu0 0.0
    %1475 = vmatpush1.msra.mxu0 0.0
    %1476 = vmatprep.subr.mxu0 0.0
    %1477 = vmatpush1.msra.mxu0 0.0
    %1478 = vmatprep.subr.mxu0 0.0
    %1479 = vmatpush1.msra.mxu0 %v1242
    %1480 = vmatprep.subr.mxu0 0.0
    %1481 = vmatpush1.msra.mxu0 %v1241
    %1482 = vmatprep.subr.mxu0 0.0
    %1483 = vmatpush1.msra.mxu0 %v1240
    %1484 = vmatprep.subr.mxu0 0.0
    %1485 = vmatpush1.msra.mxu0 %v1239
    %1486 = vmatprep.subr.mxu0 0.0
    %1487 = vmatpush2.msra.mxu0 0.0
    %1488 = vmatprep.subr.mxu0 0.0
    %1489 = vmatpush2.msra.mxu0 0.0
    %1490 = vmatprep.subr.mxu0 0.0
    %1491 = vmatpush2.msra.mxu0 0.0
    %1492 = vmatprep.subr.mxu0 0.0
    %1493 = vmatpush2.msra.mxu0 0.0
    %1494 = vmatprep.subr.mxu0 0.0
    %1495 = vmatpush2.msra.mxu0 0.0
    %1496 = vmatprep.subr.mxu0 0.0
    %1497 = vmatpush2.msra.mxu0 0.0
    %1498 = vmatprep.subr.mxu0 0.0
    %1499 = vmatpush2.msra.mxu0 0.0
    %1500 = vmatprep.subr.mxu0 0.0
    %1501 = vmatpush2.msra.mxu0 0.0
    %1502 = vmatprep.subr.mxu0 0.0
    %1503 = vmatpush2.msra.mxu0 0.0
    %1504 = vmatprep.subr.mxu0 0.0
    %1505 = vmatpush2.msra.mxu0 0.0
    %1506 = vmatprep.subr.mxu0 0.0
    %1507 = vmatpush2.msra.mxu0 0.0
    %1508 = vmatprep.subr.mxu0 0.0
    %1509 = vmatpush2.msra.mxu0 0.0
    %1510 = vmatprep.subr.mxu0 0.0
    %1511 = vmatpush2.msra.mxu0 0.0
    %1512 = vmatprep.subr.mxu0 0.0
    %1513 = vmatpush2.msra.mxu0 0.0
    %1514 = vmatprep.subr.mxu0 0.0
    %1515 = vmatpush2.msra.mxu0 0.0
    %1516 = vmatprep.subr.mxu0 0.0
    %1517 = vmatpush2.msra.mxu0 0.0
    %1518 = vmatprep.mubr.f32.mxu0 0.0
    %1519 = vmatmul.mubr.f32.gmra.mxu0 %v1452
    %v1520 = vpop.f32.mrf.mxu0
    %v1521 = vadd.f32 0.0, %v1520
    %v1522 = vpop.f32.mrf.mxu0
    %1523 = vdwg.mxu0
    %v1524 = vadd.f32 %v1211, %v1521
    %v1525 = vxor.u32 %v1524, 2147483648
    %v1526 = vmul.f32 %v1525, 1.442695
    %v1527 = vpow.pop %v1526
    %v1528 = vadd.f32 %v1527, 1.0
    %v1529 = vrcp.pop %v1528
    %v1530 = vmul.f32 1.0, %v1529
    %v1531 = vtanh.pop %v1524
    %v1532 = vmul.f32 %v1530, %v1442
    %1534 = vrot.lane.b32.xlu0 %v1531, 64
    %v1535 = vpop.permute.xlu0 %1534
    %v1537 = vmul.f32 %v1530, %v1535
    %1539 = vrot.lane.b32.xlu0 %v1537, 32
    %v1540 = vpop.permute.xlu0 %1539
    %v1542 = vadd.f32 %v1532, %v1540
    %v1543 = vtanh.pop %v1542
    %1545 = vrot.lane.b32.xlu0 %v1543, 64
    %v1546 = vpop.permute.xlu0 %1545
    %v1548 = vmul.f32 %v1530, %v1546
    %1550 = vrot.lane.b32.xlu0 %v1548, 32
    %v1551 = vpop.permute.xlu0 %1550
    %v1552 = vsel %vm81, %v1551, 0
    %1554 = vmatprep.subr.mxu0 0.0
    %1555 = vmatpush1.msra.mxu0 0.0
    %1556 = vmatprep.subr.mxu0 0.0
    %1557 = vmatpush1.msra.mxu0 0.0
    %1558 = vmatprep.subr.mxu0 0.0
    %1559 = vmatpush1.msra.mxu0 0.0
    %1560 = vmatprep.subr.mxu0 0.0
    %1561 = vmatpush1.msra.mxu0 0.0
    %1562 = vmatprep.subr.mxu0 0.0
    %1563 = vmatpush1.msra.mxu0 0.0
    %1564 = vmatprep.subr.mxu0 0.0
    %1565 = vmatpush1.msra.mxu0 0.0
    %1566 = vmatprep.subr.mxu0 0.0
    %1567 = vmatpush1.msra.mxu0 0.0
    %1568 = vmatprep.subr.mxu0 0.0
    %1569 = vmatpush1.msra.mxu0 0.0
    %1570 = vmatprep.subr.mxu0 0.0
    %1571 = vmatpush1.msra.mxu0 0.0
    %1572 = vmatprep.subr.mxu0 0.0
    %1573 = vmatpush1.msra.mxu0 0.0
    %1574 = vmatprep.subr.mxu0 0.0
    %1575 = vmatpush1.msra.mxu0 0.0
    %1576 = vmatprep.subr.mxu0 0.0
    %1577 = vmatpush1.msra.mxu0 0.0
    %1578 = vmatprep.subr.mxu0 0.0
    %1579 = vmatpush1.msra.mxu0 %v1242
    %1580 = vmatprep.subr.mxu0 0.0
    %1581 = vmatpush1.msra.mxu0 %v1241
    %1582 = vmatprep.subr.mxu0 0.0
    %1583 = vmatpush1.msra.mxu0 %v1240
    %1584 = vmatprep.subr.mxu0 0.0
    %1585 = vmatpush1.msra.mxu0 %v1239
    %1586 = vmatprep.subr.mxu0 0.0
    %1587 = vmatpush2.msra.mxu0 0.0
    %1588 = vmatprep.subr.mxu0 0.0
    %1589 = vmatpush2.msra.mxu0 0.0
    %1590 = vmatprep.subr.mxu0 0.0
    %1591 = vmatpush2.msra.mxu0 0.0
    %1592 = vmatprep.subr.mxu0 0.0
    %1593 = vmatpush2.msra.mxu0 0.0
    %1594 = vmatprep.subr.mxu0 0.0
    %1595 = vmatpush2.msra.mxu0 0.0
    %1596 = vmatprep.subr.mxu0 0.0
    %1597 = vmatpush2.msra.mxu0 0.0
    %1598 = vmatprep.subr.mxu0 0.0
    %1599 = vmatpush2.msra.mxu0 0.0
    %1600 = vmatprep.subr.mxu0 0.0
    %1601 = vmatpush2.msra.mxu0 0.0
    %1602 = vmatprep.subr.mxu0 0.0
    %1603 = vmatpush2.msra.mxu0 0.0
    %1604 = vmatprep.subr.mxu0 0.0
    %1605 = vmatpush2.msra.mxu0 0.0
    %1606 = vmatprep.subr.mxu0 0.0
    %1607 = vmatpush2.msra.mxu0 0.0
    %1608 = vmatprep.subr.mxu0 0.0
    %1609 = vmatpush2.msra.mxu0 0.0
    %1610 = vmatprep.subr.mxu0 0.0
    %1611 = vmatpush2.msra.mxu0 0.0
    %1612 = vmatprep.subr.mxu0 0.0
    %1613 = vmatpush2.msra.mxu0 0.0
    %1614 = vmatprep.subr.mxu0 0.0
    %1615 = vmatpush2.msra.mxu0 0.0
    %1616 = vmatprep.subr.mxu0 0.0
    %1617 = vmatpush2.msra.mxu0 0.0
    %1618 = vmatprep.mubr.f32.mxu0 0.0
    %1619 = vmatmul.mubr.f32.gmra.mxu0 %v1552
    %v1620 = vpop.f32.mrf.mxu0
    %v1621 = vadd.f32 0.0, %v1620
    %v1622 = vpop.f32.mrf.mxu0
    %1623 = vdwg.mxu0
    %v1624 = vadd.f32 %v1216, %v1621
    %v1625 = vxor.u32 %v1624, 2147483648
    %v1626 = vmul.f32 %v1625, 1.442695
    %v1627 = vpow.pop %v1626
    %v1628 = vadd.f32 %v1627, 1.0
    %v1629 = vrcp.pop %v1628
    %v1630 = vmul.f32 1.0, %v1629
    %v1631 = vtanh.pop %v1624
    %v1632 = vmul.f32 %v1630, %v1542
    %1634 = vrot.lane.b32.xlu0 %v1631, 64
    %v1635 = vpop.permute.xlu0 %1634
    %v1637 = vmul.f32 %v1630, %v1635
    %1639 = vrot.lane.b32.xlu0 %v1637, 32
    %v1640 = vpop.permute.xlu0 %1639
    %v1642 = vadd.f32 %v1632, %v1640
    %v1643 = vtanh.pop %v1642
    %1645 = vrot.lane.b32.xlu0 %v1643, 64
    %v1646 = vpop.permute.xlu0 %1645
    %v1648 = vmul.f32 %v1630, %v1646
    %1650 = vrot.lane.b32.xlu0 %v1648, 32
    %v1651 = vpop.permute.xlu0 %1650
    %v1652 = vsel %vm81, %v1651, 0
    %1654 = vmatprep.subr.mxu0 0.0
    %1655 = vmatpush1.msra.mxu0 0.0
    %1656 = vmatprep.subr.mxu0 0.0
    %1657 = vmatpush1.msra.mxu0 0.0
    %1658 = vmatprep.subr.mxu0 0.0
    %1659 = vmatpush1.msra.mxu0 0.0
    %1660 = vmatprep.subr.mxu0 0.0
    %1661 = vmatpush1.msra.mxu0 0.0
    %1662 = vmatprep.subr.mxu0 0.0
    %1663 = vmatpush1.msra.mxu0 0.0
    %1664 = vmatprep.subr.mxu0 0.0
    %1665 = vmatpush1.msra.mxu0 0.0
    %1666 = vmatprep.subr.mxu0 0.0
    %1667 = vmatpush1.msra.mxu0 0.0
    %1668 = vmatprep.subr.mxu0 0.0
    %1669 = vmatpush1.msra.mxu0 0.0
    %1670 = vmatprep.subr.mxu0 0.0
    %1671 = vmatpush1.msra.mxu0 0.0
    %1672 = vmatprep.subr.mxu0 0.0
    %1673 = vmatpush1.msra.mxu0 0.0
    %1674 = vmatprep.subr.mxu0 0.0
    %1675 = vmatpush1.msra.mxu0 0.0
    %1676 = vmatprep.subr.mxu0 0.0
    %1677 = vmatpush1.msra.mxu0 0.0
    %1678 = vmatprep.subr.mxu0 0.0
    %1679 = vmatpush1.msra.mxu0 %v1242
    %1680 = vmatprep.subr.mxu0 0.0
    %1681 = vmatpush1.msra.mxu0 %v1241
    %1682 = vmatprep.subr.mxu0 0.0
    %1683 = vmatpush1.msra.mxu0 %v1240
    %1684 = vmatprep.subr.mxu0 0.0
    %1685 = vmatpush1.msra.mxu0 %v1239
    %1686 = vmatprep.subr.mxu0 0.0
    %1687 = vmatpush2.msra.mxu0 0.0
    %1688 = vmatprep.subr.mxu0 0.0
    %1689 = vmatpush2.msra.mxu0 0.0
    %1690 = vmatprep.subr.mxu0 0.0
    %1691 = vmatpush2.msra.mxu0 0.0
    %1692 = vmatprep.subr.mxu0 0.0
    %1693 = vmatpush2.msra.mxu0 0.0
    %1694 = vmatprep.subr.mxu0 0.0
    %1695 = vmatpush2.msra.mxu0 0.0
    %1696 = vmatprep.subr.mxu0 0.0
    %1697 = vmatpush2.msra.mxu0 0.0
    %1698 = vmatprep.subr.mxu0 0.0
    %1699 = vmatpush2.msra.mxu0 0.0
    %1700 = vmatprep.subr.mxu0 0.0
    %1701 = vmatpush2.msra.mxu0 0.0
    %1702 = vmatprep.subr.mxu0 0.0
    %1703 = vmatpush2.msra.mxu0 0.0
    %1704 = vmatprep.subr.mxu0 0.0
    %1705 = vmatpush2.msra.mxu0 0.0
    %1706 = vmatprep.subr.mxu0 0.0
    %1707 = vmatpush2.msra.mxu0 0.0
    %1708 = vmatprep.subr.mxu0 0.0
    %1709 = vmatpush2.msra.mxu0 0.0
    %1710 = vmatprep.subr.mxu0 0.0
    %1711 = vmatpush2.msra.mxu0 0.0
    %1712 = vmatprep.subr.mxu0 0.0
    %1713 = vmatpush2.msra.mxu0 0.0
    %1714 = vmatprep.subr.mxu0 0.0
    %1715 = vmatpush2.msra.mxu0 0.0
    %1716 = vmatprep.subr.mxu0 0.0
    %1717 = vmatpush2.msra.mxu0 0.0
    %1718 = vmatprep.mubr.f32.mxu0 0.0
    %1719 = vmatmul.mubr.f32.gmra.mxu0 %v1652
    %v1720 = vpop.f32.mrf.mxu0
    %v1721 = vadd.f32 0.0, %v1720
    %v1722 = vpop.f32.mrf.mxu0
    %1723 = vdwg.mxu0
    %v1724 = vadd.f32 %v1221, %v1721
    %v1725 = vxor.u32 %v1724, 2147483648
    %v1726 = vmul.f32 %v1725, 1.442695
    %v1727 = vpow.pop %v1726
    %v1728 = vadd.f32 %v1727, 1.0
    %v1729 = vrcp.pop %v1728
    %v1730 = vmul.f32 1.0, %v1729
    %v1731 = vtanh.pop %v1724
    %v1732 = vmul.f32 %v1730, %v1642
    %1734 = vrot.lane.b32.xlu0 %v1731, 64
    %v1735 = vpop.permute.xlu0 %1734
    %v1737 = vmul.f32 %v1730, %v1735
    %1739 = vrot.lane.b32.xlu0 %v1737, 32
    %v1740 = vpop.permute.xlu0 %1739
    %v1742 = vadd.f32 %v1732, %v1740
    %v1743 = vtanh.pop %v1742
    %1745 = vrot.lane.b32.xlu0 %v1743, 64
    %v1746 = vpop.permute.xlu0 %1745
    %v1748 = vmul.f32 %v1730, %v1746
    %1750 = vrot.lane.b32.xlu0 %v1748, 32
    %v1751 = vpop.permute.xlu0 %1750
    %v1752 = vsel %vm81, %v1751, 0
    %1754 = vmatprep.subr.mxu0 0.0
    %1755 = vmatpush1.msra.mxu0 0.0
    %1756 = vmatprep.subr.mxu0 0.0
    %1757 = vmatpush1.msra.mxu0 0.0
    %1758 = vmatprep.subr.mxu0 0.0
    %1759 = vmatpush1.msra.mxu0 0.0
    %1760 = vmatprep.subr.mxu0 0.0
    %1761 = vmatpush1.msra.mxu0 0.0
    %1762 = vmatprep.subr.mxu0 0.0
    %1763 = vmatpush1.msra.mxu0 0.0
    %1764 = vmatprep.subr.mxu0 0.0
    %1765 = vmatpush1.msra.mxu0 0.0
    %1766 = vmatprep.subr.mxu0 0.0
    %1767 = vmatpush1.msra.mxu0 0.0
    %1768 = vmatprep.subr.mxu0 0.0
    %1769 = vmatpush1.msra.mxu0 0.0
    %1770 = vmatprep.subr.mxu0 0.0
    %1771 = vmatpush1.msra.mxu0 0.0
    %1772 = vmatprep.subr.mxu0 0.0
    %1773 = vmatpush1.msra.mxu0 0.0
    %1774 = vmatprep.subr.mxu0 0.0
    %1775 = vmatpush1.msra.mxu0 0.0
    %1776 = vmatprep.subr.mxu0 0.0
    %1777 = vmatpush1.msra.mxu0 0.0
    %1778 = vmatprep.subr.mxu0 0.0
    %1779 = vmatpush1.msra.mxu0 %v1242
    %1780 = vmatprep.subr.mxu0 0.0
    %1781 = vmatpush1.msra.mxu0 %v1241
    %1782 = vmatprep.subr.mxu0 0.0
    %1783 = vmatpush1.msra.mxu0 %v1240
    %1784 = vmatprep.subr.mxu0 0.0
    %1785 = vmatpush1.msra.mxu0 %v1239
    %1786 = vmatprep.subr.mxu0 0.0
    %1787 = vmatpush2.msra.mxu0 0.0
    %1788 = vmatprep.subr.mxu0 0.0
    %1789 = vmatpush2.msra.mxu0 0.0
    %1790 = vmatprep.subr.mxu0 0.0
    %1791 = vmatpush2.msra.mxu0 0.0
    %1792 = vmatprep.subr.mxu0 0.0
    %1793 = vmatpush2.msra.mxu0 0.0
    %1794 = vmatprep.subr.mxu0 0.0
    %1795 = vmatpush2.msra.mxu0 0.0
    %1796 = vmatprep.subr.mxu0 0.0
    %1797 = vmatpush2.msra.mxu0 0.0
    %1798 = vmatprep.subr.mxu0 0.0
    %1799 = vmatpush2.msra.mxu0 0.0
    %1800 = vmatprep.subr.mxu0 0.0
    %1801 = vmatpush2.msra.mxu0 0.0
    %1802 = vmatprep.subr.mxu0 0.0
    %1803 = vmatpush2.msra.mxu0 0.0
    %1804 = vmatprep.subr.mxu0 0.0
    %1805 = vmatpush2.msra.mxu0 0.0
    %1806 = vmatprep.subr.mxu0 0.0
    %1807 = vmatpush2.msra.mxu0 0.0
    %1808 = vmatprep.subr.mxu0 0.0
    %1809 = vmatpush2.msra.mxu0 0.0
    %1810 = vmatprep.subr.mxu0 0.0
    %1811 = vmatpush2.msra.mxu0 0.0
    %1812 = vmatprep.subr.mxu0 0.0
    %1813 = vmatpush2.msra.mxu0 0.0
    %1814 = vmatprep.subr.mxu0 0.0
    %1815 = vmatpush2.msra.mxu0 0.0
    %1816 = vmatprep.subr.mxu0 0.0
    %1817 = vmatpush2.msra.mxu0 0.0
    %1818 = vmatprep.mubr.f32.mxu0 0.0
    %1819 = vmatmul.mubr.f32.gmra.mxu0 %v1752
    %v1820 = vpop.f32.mrf.mxu0
    %v1821 = vadd.f32 0.0, %v1820
    %v1822 = vpop.f32.mrf.mxu0
    %1823 = vdwg.mxu0
    %v1824 = vadd.f32 %v1226, %v1821
    %v1825 = vxor.u32 %v1824, 2147483648
    %v1826 = vmul.f32 %v1825, 1.442695
    %v1827 = vpow.pop %v1826
    %v1828 = vadd.f32 %v1827, 1.0
    %v1829 = vrcp.pop %v1828
    %v1830 = vmul.f32 1.0, %v1829
    %v1831 = vtanh.pop %v1824
    %v1832 = vmul.f32 %v1830, %v1742
    %1834 = vrot.lane.b32.xlu0 %v1831, 64
    %v1835 = vpop.permute.xlu0 %1834
    %v1837 = vmul.f32 %v1830, %v1835
    %1839 = vrot.lane.b32.xlu0 %v1837, 32
    %v1840 = vpop.permute.xlu0 %1839
    %v1842 = vadd.f32 %v1832, %v1840
    %v1843 = vtanh.pop %v1842
    %1845 = vrot.lane.b32.xlu0 %v1843, 64
    %v1846 = vpop.permute.xlu0 %1845
    %v1848 = vmul.f32 %v1830, %v1846
    %1850 = vrot.lane.b32.xlu0 %v1848, 32
    %v1851 = vpop.permute.xlu0 %1850
    %v1852 = vsel %vm81, %v1851, 0
    %1854 = vmatprep.subr.mxu0 0.0
    %1855 = vmatpush1.msra.mxu0 0.0
    %1856 = vmatprep.subr.mxu0 0.0
    %1857 = vmatpush1.msra.mxu0 0.0
    %1858 = vmatprep.subr.mxu0 0.0
    %1859 = vmatpush1.msra.mxu0 0.0
    %1860 = vmatprep.subr.mxu0 0.0
    %1861 = vmatpush1.msra.mxu0 0.0
    %1862 = vmatprep.subr.mxu0 0.0
    %1863 = vmatpush1.msra.mxu0 0.0
    %1864 = vmatprep.subr.mxu0 0.0
    %1865 = vmatpush1.msra.mxu0 0.0
    %1866 = vmatprep.subr.mxu0 0.0
    %1867 = vmatpush1.msra.mxu0 0.0
    %1868 = vmatprep.subr.mxu0 0.0
    %1869 = vmatpush1.msra.mxu0 0.0
    %1870 = vmatprep.subr.mxu0 0.0
    %1871 = vmatpush1.msra.mxu0 0.0
    %1872 = vmatprep.subr.mxu0 0.0
    %1873 = vmatpush1.msra.mxu0 0.0
    %1874 = vmatprep.subr.mxu0 0.0
    %1875 = vmatpush1.msra.mxu0 0.0
    %1876 = vmatprep.subr.mxu0 0.0
    %1877 = vmatpush1.msra.mxu0 0.0
    %1878 = vmatprep.subr.mxu0 0.0
    %1879 = vmatpush1.msra.mxu0 %v1242
    %1880 = vmatprep.subr.mxu0 0.0
    %1881 = vmatpush1.msra.mxu0 %v1241
    %1882 = vmatprep.subr.mxu0 0.0
    %1883 = vmatpush1.msra.mxu0 %v1240
    %1884 = vmatprep.subr.mxu0 0.0
    %1885 = vmatpush1.msra.mxu0 %v1239
    %1886 = vmatprep.subr.mxu0 0.0
    %1887 = vmatpush2.msra.mxu0 0.0
    %1888 = vmatprep.subr.mxu0 0.0
    %1889 = vmatpush2.msra.mxu0 0.0
    %1890 = vmatprep.subr.mxu0 0.0
    %1891 = vmatpush2.msra.mxu0 0.0
    %1892 = vmatprep.subr.mxu0 0.0
    %1893 = vmatpush2.msra.mxu0 0.0
    %1894 = vmatprep.subr.mxu0 0.0
    %1895 = vmatpush2.msra.mxu0 0.0
    %1896 = vmatprep.subr.mxu0 0.0
    %1897 = vmatpush2.msra.mxu0 0.0
    %1898 = vmatprep.subr.mxu0 0.0
    %1899 = vmatpush2.msra.mxu0 0.0
    %1900 = vmatprep.subr.mxu0 0.0
    %1901 = vmatpush2.msra.mxu0 0.0
    %1902 = vmatprep.subr.mxu0 0.0
    %1903 = vmatpush2.msra.mxu0 0.0
    %1904 = vmatprep.subr.mxu0 0.0
    %1905 = vmatpush2.msra.mxu0 0.0
    %1906 = vmatprep.subr.mxu0 0.0
    %1907 = vmatpush2.msra.mxu0 0.0
    %1908 = vmatprep.subr.mxu0 0.0
    %1909 = vmatpush2.msra.mxu0 0.0
    %1910 = vmatprep.subr.mxu0 0.0
    %1911 = vmatpush2.msra.mxu0 0.0
    %1912 = vmatprep.subr.mxu0 0.0
    %1913 = vmatpush2.msra.mxu0 0.0
    %1914 = vmatprep.subr.mxu0 0.0
    %1915 = vmatpush2.msra.mxu0 0.0
    %1916 = vmatprep.subr.mxu0 0.0
    %1917 = vmatpush2.msra.mxu0 0.0
    %1918 = vmatprep.mubr.f32.mxu0 0.0
    %1919 = vmatmul.mubr.f32.gmra.mxu0 %v1852
    %v1920 = vpop.f32.mrf.mxu0
    %v1921 = vadd.f32 0.0, %v1920
    %v1922 = vpop.f32.mrf.mxu0
    %1923 = vdwg.mxu0
    %v1924 = vadd.f32 %v1231, %v1921
    %v1925 = vxor.u32 %v1924, 2147483648
    %v1926 = vmul.f32 %v1925, 1.442695
    %v1927 = vpow.pop %v1926
    %v1928 = vadd.f32 %v1927, 1.0
    %v1929 = vrcp.pop %v1928
    %v1930 = vmul.f32 1.0, %v1929
    %v1931 = vtanh.pop %v1924
    %v1932 = vmul.f32 %v1930, %v1842
    %1934 = vrot.lane.b32.xlu0 %v1931, 64
    %v1935 = vpop.permute.xlu0 %1934
    %v1937 = vmul.f32 %v1930, %v1935
    %1939 = vrot.lane.b32.xlu0 %v1937, 32
    %v1940 = vpop.permute.xlu0 %1939
    %v1942 = vadd.f32 %v1932, %v1940
    %v1943 = vtanh.pop %v1942
    %1945 = vrot.lane.b32.xlu0 %v1943, 64
    %v1946 = vpop.permute.xlu0 %1945
    %v1948 = vmul.f32 %v1930, %v1946
    %1950 = vrot.lane.b32.xlu0 %v1948, 32
    %v1951 = vpop.permute.xlu0 %1950
    %v1952 = vsel %vm81, %v1951, 0
    %1954 = vmatprep.subr.mxu0 0.0
    %1955 = vmatpush1.msra.mxu0 0.0
    %1956 = vmatprep.subr.mxu0 0.0
    %1957 = vmatpush1.msra.mxu0 0.0
    %1958 = vmatprep.subr.mxu0 0.0
    %1959 = vmatpush1.msra.mxu0 0.0
    %1960 = vmatprep.subr.mxu0 0.0
    %1961 = vmatpush1.msra.mxu0 0.0
    %1962 = vmatprep.subr.mxu0 0.0
    %1963 = vmatpush1.msra.mxu0 0.0
    %1964 = vmatprep.subr.mxu0 0.0
    %1965 = vmatpush1.msra.mxu0 0.0
    %1966 = vmatprep.subr.mxu0 0.0
    %1967 = vmatpush1.msra.mxu0 0.0
    %1968 = vmatprep.subr.mxu0 0.0
    %1969 = vmatpush1.msra.mxu0 0.0
    %1970 = vmatprep.subr.mxu0 0.0
    %1971 = vmatpush1.msra.mxu0 0.0
    %1972 = vmatprep.subr.mxu0 0.0
    %1973 = vmatpush1.msra.mxu0 0.0
    %1974 = vmatprep.subr.mxu0 0.0
    %1975 = vmatpush1.msra.mxu0 0.0
    %1976 = vmatprep.subr.mxu0 0.0
    %1977 = vmatpush1.msra.mxu0 0.0
    %1978 = vmatprep.subr.mxu0 0.0
    %1979 = vmatpush1.msra.mxu0 %v1242
    %1980 = vmatprep.subr.mxu0 0.0
    %1981 = vmatpush1.msra.mxu0 %v1241
    %1982 = vmatprep.subr.mxu0 0.0
    %1983 = vmatpush1.msra.mxu0 %v1240
    %1984 = vmatprep.subr.mxu0 0.0
    %1985 = vmatpush1.msra.mxu0 %v1239
    %1986 = vmatprep.subr.mxu0 0.0
    %1987 = vmatpush2.msra.mxu0 0.0
    %1988 = vmatprep.subr.mxu0 0.0
    %1989 = vmatpush2.msra.mxu0 0.0
    %1990 = vmatprep.subr.mxu0 0.0
    %1991 = vmatpush2.msra.mxu0 0.0
    %1992 = vmatprep.subr.mxu0 0.0
    %1993 = vmatpush2.msra.mxu0 0.0
    %1994 = vmatprep.subr.mxu0 0.0
    %1995 = vmatpush2.msra.mxu0 0.0
    %1996 = vmatprep.subr.mxu0 0.0
    %1997 = vmatpush2.msra.mxu0 0.0
    %1998 = vmatprep.subr.mxu0 0.0
    %1999 = vmatpush2.msra.mxu0 0.0
    %2000 = vmatprep.subr.mxu0 0.0
    %2001 = vmatpush2.msra.mxu0 0.0
    %2002 = vmatprep.subr.mxu0 0.0
    %2003 = vmatpush2.msra.mxu0 0.0
    %2004 = vmatprep.subr.mxu0 0.0
    %2005 = vmatpush2.msra.mxu0 0.0
    %2006 = vmatprep.subr.mxu0 0.0
    %2007 = vmatpush2.msra.mxu0 0.0
    %2008 = vmatprep.subr.mxu0 0.0
    %2009 = vmatpush2.msra.mxu0 0.0
    %2010 = vmatprep.subr.mxu0 0.0
    %2011 = vmatpush2.msra.mxu0 0.0
    %2012 = vmatprep.subr.mxu0 0.0
    %2013 = vmatpush2.msra.mxu0 0.0
    %2014 = vmatprep.subr.mxu0 0.0
    %2015 = vmatpush2.msra.mxu0 0.0
    %2016 = vmatprep.subr.mxu0 0.0
    %2017 = vmatpush2.msra.mxu0 0.0
    %2018 = vmatprep.mubr.f32.mxu0 0.0
    %2019 = vmatmul.mubr.f32.gmra.mxu0 %v1952
    %v2020 = vpop.f32.mrf.mxu0
    %v2021 = vadd.f32 0.0, %v2020
    %v2022 = vpop.f32.mrf.mxu0
    %2023 = vdwg.mxu0
    %v2024 = vadd.f32 %v1236, %v2021
    %v2025 = vxor.u32 %v2024, 2147483648
    %v2026 = vmul.f32 %v2025, 1.442695
    %v2027 = vpow.pop %v2026
    %v2028 = vadd.f32 %v2027, 1.0
    %v2029 = vrcp.pop %v2028
    %v2030 = vmul.f32 1.0, %v2029
    %v2031 = vtanh.pop %v2024
    %v2032 = vmul.f32 %v2030, %v1942
    %2034 = vrot.lane.b32.xlu0 %v2031, 64
    %v2035 = vpop.permute.xlu0 %2034
    %v2037 = vmul.f32 %v2030, %v2035
    %2039 = vrot.lane.b32.xlu0 %v2037, 32
    %v2040 = vpop.permute.xlu0 %2039
    %v2042 = vadd.f32 %v2032, %v2040
    %v2043 = vtanh.pop %v2042
    %2045 = vrot.lane.b32.xlu0 %v2043, 64
    %v2046 = vpop.permute.xlu0 %2045
    %v2048 = vmul.f32 %v2030, %v2046
    %2050 = vrot.lane.b32.xlu0 %v2048, 32
    %v2051 = vpop.permute.xlu0 %2050
    %s2053 = scalar_lea.vmem %s13, 8
    %2054 = vst.msk [vmem:[%s2053] sm:$0xff] %vm81, %v2051
    %2056 = vrot.lane.b32.xlu0 %v2042, 96
    %v2057 = vpop.permute.xlu0 %2056
    %s2059 = scalar_lea.vmem %s14, 8
    %2060 = vst.msk [vmem:[%s2059] sm:$0xff] %vm81, %v2057
    %v2061 = vld [vmem:[#allocation6] sm:$0xff]
    %v2062 = vld [vmem:[#allocation6 + $0x8] sm:$0xff]
    %v2063 = vld [vmem:[#allocation6 + $0x10] sm:$0xff]
    %v2064 = vld [vmem:[#allocation6 + $0x18] sm:$0xff]
    %v2065 = vld [vmem:[#allocation7] sm:$0x1]
    %v2067 = vlaneseq
    %v2068 = vshrl.u32 %v2067, 7
    %v2069 = vsub.s32 0, %v2068
    %v2070 = vrot.slane %v2065, %v2069
    %v2072 = vsel %vm81, %v2051, 0
    %2074 = vmatprep.subr.mxu0 0.0
    %2075 = vmatpush1.msra.mxu0 0.0
    %2076 = vmatprep.subr.mxu0 0.0
    %2077 = vmatpush1.msra.mxu0 0.0
    %2078 = vmatprep.subr.mxu0 0.0
    %2079 = vmatpush1.msra.mxu0 0.0
    %2080 = vmatprep.subr.mxu0 0.0
    %2081 = vmatpush1.msra.mxu0 0.0
    %2082 = vmatprep.subr.mxu0 0.0
    %2083 = vmatpush1.msra.mxu0 0.0
    %2084 = vmatprep.subr.mxu0 0.0
    %2085 = vmatpush1.msra.mxu0 0.0
    %2086 = vmatprep.subr.mxu0 0.0
    %2087 = vmatpush1.msra.mxu0 0.0
    %2088 = vmatprep.subr.mxu0 0.0
    %2089 = vmatpush1.msra.mxu0 0.0
    %2090 = vmatprep.subr.mxu0 0.0
    %2091 = vmatpush1.msra.mxu0 0.0
    %2092 = vmatprep.subr.mxu0 0.0
    %2093 = vmatpush1.msra.mxu0 0.0
    %2094 = vmatprep.subr.mxu0 0.0
    %2095 = vmatpush1.msra.mxu0 0.0
    %2096 = vmatprep.subr.mxu0 0.0
    %2097 = vmatpush1.msra.mxu0 0.0
    %2098 = vmatprep.subr.mxu0 0.0
    %2099 = vmatpush1.msra.mxu0 %v2064
    %2100 = vmatprep.subr.mxu0 0.0
    %2101 = vmatpush1.msra.mxu0 %v2063
    %2102 = vmatprep.subr.mxu0 0.0
    %2103 = vmatpush1.msra.mxu0 %v2062
    %2104 = vmatprep.subr.mxu0 0.0
    %2105 = vmatpush1.msra.mxu0 %v2061
    %2106 = vmatprep.subr.mxu0 0.0
    %2107 = vmatpush2.msra.mxu0 0.0
    %2108 = vmatprep.subr.mxu0 0.0
    %2109 = vmatpush2.msra.mxu0 0.0
    %2110 = vmatprep.subr.mxu0 0.0
    %2111 = vmatpush2.msra.mxu0 0.0
    %2112 = vmatprep.subr.mxu0 0.0
    %2113 = vmatpush2.msra.mxu0 0.0
    %2114 = vmatprep.subr.mxu0 0.0
    %2115 = vmatpush2.msra.mxu0 0.0
    %2116 = vmatprep.subr.mxu0 0.0
    %2117 = vmatpush2.msra.mxu0 0.0
    %2118 = vmatprep.subr.mxu0 0.0
    %2119 = vmatpush2.msra.mxu0 0.0
    %2120 = vmatprep.subr.mxu0 0.0
    %2121 = vmatpush2.msra.mxu0 0.0
    %2122 = vmatprep.subr.mxu0 0.0
    %2123 = vmatpush2.msra.mxu0 0.0
    %2124 = vmatprep.subr.mxu0 0.0
    %2125 = vmatpush2.msra.mxu0 0.0
    %2126 = vmatprep.subr.mxu0 0.0
    %2127 = vmatpush2.msra.mxu0 0.0
    %2128 = vmatprep.subr.mxu0 0.0
    %2129 = vmatpush2.msra.mxu0 0.0
    %2130 = vmatprep.subr.mxu0 0.0
    %2131 = vmatpush2.msra.mxu0 0.0
    %2132 = vmatprep.subr.mxu0 0.0
    %2133 = vmatpush2.msra.mxu0 0.0
    %2134 = vmatprep.subr.mxu0 0.0
    %2135 = vmatpush2.msra.mxu0 0.0
    %2136 = vmatprep.subr.mxu0 0.0
    %2137 = vmatpush2.msra.mxu0 0.0
    %2138 = vmatprep.mubr.f32.mxu0 0.0
    %2139 = vmatmul.mubr.f32.gmra.mxu0 %v1352
    %v2140 = vpop.f32.mrf.mxu0
    %v2141 = vadd.f32 %v2070, %v2140
    %v2142 = vpop.f32.mrf.mxu0
    %2143 = vmatprep.mubr.f32.mxu0 0.0
    %2144 = vmatmul.mubr.f32.gmra.mxu0 %v1452
    %v2145 = vpop.f32.mrf.mxu0
    %v2146 = vadd.f32 %v2070, %v2145
    %v2147 = vpop.f32.mrf.mxu0
    %2148 = vmatprep.mubr.f32.mxu0 0.0
    %2149 = vmatmul.mubr.f32.gmra.mxu0 %v1552
    %v2150 = vpop.f32.mrf.mxu0
    %v2151 = vadd.f32 %v2070, %v2150
    %v2152 = vpop.f32.mrf.mxu0
    %2153 = vmatprep.mubr.f32.mxu0 0.0
    %2154 = vmatmul.mubr.f32.gmra.mxu0 %v1652
    %v2155 = vpop.f32.mrf.mxu0
    %v2156 = vadd.f32 %v2070, %v2155
    %v2157 = vpop.f32.mrf.mxu0
    %2158 = vmatprep.mubr.f32.mxu0 0.0
    %2159 = vmatmul.mubr.f32.gmra.mxu0 %v1752
    %v2160 = vpop.f32.mrf.mxu0
    %v2161 = vadd.f32 %v2070, %v2160
    %v2162 = vpop.f32.mrf.mxu0
    %2163 = vmatprep.mubr.f32.mxu0 0.0
    %2164 = vmatmul.mubr.f32.gmra.mxu0 %v1852
    %v2165 = vpop.f32.mrf.mxu0
    %v2166 = vadd.f32 %v2070, %v2165
    %v2167 = vpop.f32.mrf.mxu0
    %2168 = vmatprep.mubr.f32.mxu0 0.0
    %2169 = vmatmul.mubr.f32.gmra.mxu0 %v1952
    %v2170 = vpop.f32.mrf.mxu0
    %v2171 = vadd.f32 %v2070, %v2170
    %v2172 = vpop.f32.mrf.mxu0
    %2173 = vmatprep.mubr.f32.mxu0 0.0
    %2174 = vmatmul.mubr.f32.gmra.mxu0 %v2072
    %v2175 = vpop.f32.mrf.mxu0
    %v2176 = vadd.f32 %v2070, %v2175
    %v2177 = vpop.f32.mrf.mxu0
    %2178 = vdwg.mxu0
    %vm2179 = vcmask 523264
    %2180 = vst.msk [vmem:[%s12] sm:$0xff] %vm2179, %v2141
    %2181 = vst.msk [vmem:[%s12 + $0x8] sm:$0xff] %vm2179, %v2146
    %2182 = vst.msk [vmem:[%s12 + $0x10] sm:$0xff] %vm2179, %v2151
    %2183 = vst.msk [vmem:[%s12 + $0x18] sm:$0xff] %vm2179, %v2156
    %2184 = vst.msk [vmem:[%s12 + $0x20] sm:$0xff] %vm2179, %v2161
    %2185 = vst.msk [vmem:[%s12 + $0x28] sm:$0xff] %vm2179, %v2166
    %2186 = vst.msk [vmem:[%s12 + $0x30] sm:$0xff] %vm2179, %v2171
    %2187 = vst.msk [vmem:[%s12 + $0x38] sm:$0xff] %vm2179, %v2176
    // Predicated region
    $region62: #{lstm_lm_forward.1} parent=1 // pred_check
      _
    $region63: #{lstm_lm_forward.1} parent=1 // pred_check_branch
      %2189 = sbr.rel (0) target = $region65
    $region64: #{lstm_lm_forward.1} parent=1 // pred_region
      _
    $region65: #{lstm_lm_forward.1} parent=1 // pred_fallthru
      _
    // Predicated region
    $region66: #{lstm_lm_forward.1} parent=1 // pred_check
      _
    $region67: #{lstm_lm_forward.1} parent=1 // pred_check_branch
      %2191 = sbr.rel (0) target = $region69
    $region68: #{lstm_lm_forward.1} parent=1 // pred_region
      _
    $region69: #{lstm_lm_forward.1} parent=1 // pred_fallthru
      _
    // Predicated region
    $region70: #{lstm_lm_forward.1} parent=1 // pred_check
      _
    $region71: #{lstm_lm_forward.1} parent=1 // pred_check_branch
      %2193 = sbr.rel (0) target = $region73
    $region72: #{lstm_lm_forward.1} parent=1 // pred_region
      _
    $region73: #{lstm_lm_forward.1} parent=1 // pred_fallthru
      _
    // Predicated region
    $region74: #{lstm_lm_forward.1} parent=1 // pred_check
      _
    $region75: #{lstm_lm_forward.1} parent=1 // pred_check_branch
      %2195 = sbr.rel (0) target = $region77
    $region76: #{lstm_lm_forward.1} parent=1 // pred_region
      _
    $region77: #{lstm_lm_forward.1} parent=1 // pred_fallthru
      _
    // Predicated region
    $region78: #{lstm_lm_forward.1} parent=1 // pred_check
      _
    $region79: #{lstm_lm_forward.1} parent=1 // pred_check_branch
      %2197 = sbr.rel (0) target = $region81
    $region80: #{lstm_lm_forward.1} parent=1 // pred_region
      _
    $region81: #{lstm_lm_forward.1} parent=1 // pred_fallthru
      _
    // Predicated region
    $region82: #{lstm_lm_forward.1} parent=1 // pred_check
      _
    $region83: #{lstm_lm_forward.1} parent=1 // pred_check_branch
      %2199 = sbr.rel (0) target = $region85
    $region84: #{lstm_lm_forward.1} parent=1 // pred_region
      _
    $region85: #{lstm_lm_forward.1} parent=1 // pred_fallthru
      _
    %2200 = vsyncpa [#allocation4], 1
    %2201 = vsyncpa [#allocation8], 1
    %2202 = vsyncpa [#allocation5], 1

</llo_original>
